<compile_context>
chip_gen: v7x
topology: tpu7x:2x2x1
jax: 0.10.0
libtpu: 0.0.40
codegen_flags: <defaults>
</compile_context>

<pallas_src>
import functools

import jax
import jax.numpy as jnp
from jax import lax
from jax.experimental import pallas as pl
from jax.experimental.pallas import tpu as pltpu


def _lstm_kernel(tok_ref, emb_ref, wih_ref, whh_ref, b_ref, wout_ref, bout_ref,
                 h0_ref, c0_ref,
                 out_ref, hn_ref, cn_ref,
                 x_ref, gx_ref, hall_ref, *, hidden_size, seq_len):
    H = hidden_size
    T = seq_len

    # ---- In-kernel embedding gather (token ids in SMEM, table rows in VMEM). ----
    for t in range(T):
        x_ref[pl.ds(t, 1), :] = emb_ref[pl.ds(tok_ref[t], 1), :]

    # Input-to-hidden contribution for every timestep at once (one bf16 MXU matmul,
    # fp32 accumulate) plus the combined b_ih + b_hh.  Weights arrive pre-transposed (E, 4H).
    gx_ref[...] = (
        jnp.dot(x_ref[...].astype(jnp.bfloat16), wih_ref[...],
                preferred_element_type=jnp.float32)
        + b_ref[...]
    )

    whh = whh_ref[...]            # (H, 4H) bf16, loop-invariant (Mosaic hoists RHS staging)
    h = h0_ref[...]               # (1, H) fp32
    c = c0_ref[...]               # (1, H) fp32

    # Fully unrolled serial recurrence (T is static): static-index gx loads / hall stores,
    # single-pass bf16 MXU dot on the critical path, fp32 gate math + cell state.
    for t in range(T):
        g = gx_ref[pl.ds(t, 1), :] + jnp.dot(
            h.astype(jnp.bfloat16), whh,
            preferred_element_type=jnp.float32)            # (1, 4H) fp32
        # Two EUP passes over the full 128-lane gate vreg, then 32-lane windows.
        sig = jax.nn.sigmoid(g)
        th = jnp.tanh(g)
        i_g = sig[:, 0:H]
        f_g = sig[:, H:2 * H]
        g_g = th[:, 2 * H:3 * H]
        o_g = sig[:, 3 * H:4 * H]
        c = f_g * c + i_g * g_g
        h = o_g * jnp.tanh(c)
        hall_ref[pl.ds(t, 1), :] = h

    hn_ref[...] = h
    cn_ref[...] = c

    # Output projection (bf16 MXU, fp32 accumulate) + log_softmax(dim=1) in fp32.
    # wout/bout are lane-padded to Vp=128: padded columns have zero weights and -1e9 bias,
    # so they contribute exp(-1e9 - m) == 0 to the normalizer and the store is lane-dense.
    logits = (
        jnp.dot(hall_ref[...].astype(jnp.bfloat16), wout_ref[...],
                preferred_element_type=jnp.float32)
        + bout_ref[...]
    )                                                      # (T, Vp)
    m = jnp.max(logits, axis=1, keepdims=True)
    lse = jnp.log(jnp.sum(jnp.exp(logits - m), axis=1, keepdims=True)) + m
    out_ref[...] = logits - lse


def prepare_params(params, lane_pad=128):
    """One-time (off the hot path) weight prep: transposes, bf16 casts, bias fuse, V padding."""
    H = params["w_hh"].shape[1]
    V = params["w_out"].shape[0]
    Vp = ((V + lane_pad - 1) // lane_pad) * lane_pad

    wout_t = jnp.zeros((H, Vp), jnp.bfloat16)
    wout_t = wout_t.at[:, :V].set(params["w_out"].T.astype(jnp.bfloat16))
    b_out = jnp.full((1, Vp), -1e9, jnp.float32)
    b_out = b_out.at[0, :V].set(params["b_out"].astype(jnp.float32))

    return {
        "embed": params["embed"].astype(jnp.float32),                      # (V, E)
        "wih_t": params["w_ih"].T.astype(jnp.bfloat16),                    # (E, 4H)
        "whh_t": params["w_hh"].T.astype(jnp.bfloat16),                    # (H, 4H)
        "b": (params["b_ih"] + params["b_hh"]).reshape(1, 4 * H).astype(jnp.float32),
        "wout_t": wout_t,                                                  # (H, Vp)
        "b_out": b_out,                                                    # (1, Vp)
    }


@functools.partial(jax.jit, static_argnames=("vocab",), donate_argnums=(2,))
def lstmnet_forward(tokens, prepared, hidden, *, vocab):
    """Equivalent of LSTMnet.forward(input); also returns the updated hidden state.

    h0/c0 are donated and aliased into h_n/c_n (true in-place hidden-state update), so the
    caller must treat the passed-in hidden state as consumed.
    """
    h0, c0 = hidden
    T = tokens.shape[0]
    H = h0.shape[-1]
    E = prepared["embed"].shape[1]
    Vp = prepared["wout_t"].shape[1]

    smem = pl.BlockSpec(memory_space=pltpu.MemorySpace.SMEM)
    vmem = pl.BlockSpec(memory_space=pltpu.MemorySpace.VMEM)
    kernel = functools.partial(_lstm_kernel, hidden_size=H, seq_len=T)

    out_p, h_n, c_n = pl.pallas_call(
        kernel,
        out_shape=(
            jax.ShapeDtypeStruct((T, Vp), jnp.float32),  # lane-dense padded log-probs
            jax.ShapeDtypeStruct((1, H), jnp.float32),   # h_n
            jax.ShapeDtypeStruct((1, H), jnp.float32),   # c_n
        ),
        in_specs=[smem] + [vmem] * 8,
        out_specs=(vmem, vmem, vmem),
        scratch_shapes=[
            pltpu.VMEM((T, E), jnp.float32),        # gathered embeddings
            pltpu.VMEM((T, 4 * H), jnp.float32),    # x @ W_ih^T + b for all steps
            pltpu.VMEM((T, H), jnp.float32),        # all hidden states
        ],
        # In-place hidden-state update: h0 -> h_n, c0 -> c_n.
        input_output_aliases={7: 1, 8: 2},
    )(tokens, prepared["embed"], prepared["wih_t"], prepared["whh_t"], prepared["b"],
      prepared["wout_t"], prepared["b_out"], h0, c0)

    return out_p[:, :vocab], (h_n, c_n)


def _reference_forward(tokens, params, hidden):
    """Pure-JAX fp32 reference matching PyTorch nn.LSTM semantics (gate order i,f,g,o)."""
    h0, c0 = hidden
    emb = params["embed"][tokens]                       # (T, E)

    def step(carry, x):
        h, c = carry                                    # (H,)
        g = (x @ params["w_ih"].T + params["b_ih"]
             + h @ params["w_hh"].T + params["b_hh"])   # (4H,)
        i_g, f_g, g_g, o_g = jnp.split(g, 4)
        i_g, f_g, o_g = jax.nn.sigmoid(i_g), jax.nn.sigmoid(f_g), jax.nn.sigmoid(o_g)
        g_g = jnp.tanh(g_g)
        c = f_g * c + i_g * g_g
        h = o_g * jnp.tanh(c)
        return (h, c), h

    (h_n, c_n), hs = lax.scan(step, (h0[0], c0[0]), emb)
    logits = hs @ params["w_out"].T + params["b_out"]
    return jax.nn.log_softmax(logits, axis=1), (h_n, c_n)


if __name__ == "__main__":
    # Small shapes consistent with the module's forward: seq=8, embed=hidden=32, vocab=16.
    V, E, H, T = 16, 32, 32, 8

    key = jax.random.PRNGKey(0)
    ks = jax.random.split(key, 8)
    bound = 1.0 / jnp.sqrt(jnp.float32(H))
    u = lambda k, shape: jax.random.uniform(k, shape, jnp.float32, -bound, bound)

    params = {
        "embed": jax.random.normal(ks[0], (V, E), jnp.float32),  # nn.Embedding default ~ N(0,1)
        "w_ih": u(ks[1], (4 * H, E)),
        "w_hh": u(ks[2], (4 * H, H)),
        "b_ih": u(ks[3], (4 * H,)),
        "b_hh": u(ks[4], (4 * H,)),
        "w_out": u(ks[5], (V, H)),
        "b_out": u(ks[6], (V,)),
    }
    hidden = (jnp.zeros((1, H), jnp.float32), jnp.zeros((1, H), jnp.float32))  # initHidden()
    tokens = jax.random.randint(ks[7], (T,), 0, V)

    # Compute the reference BEFORE the kernel: the kernel donates/consumes h0/c0.
    ref_out, (ref_h, ref_c) = _reference_forward(tokens, params, hidden)

    prepared = prepare_params(params)        # one-time weight prep, hoisted off the hot path
    out, (h_n, c_n) = lstmnet_forward(tokens, prepared, hidden, vocab=V)
    out = jax.block_until_ready(out)
    jax.block_until_ready((h_n, c_n))

    assert out.shape == (T, V) and out.dtype == jnp.float32
    # Kernel matmuls run as single-pass bf16 on the MXU (fp32 accumulate), so compare
    # against the fp32 reference with a correspondingly relaxed tolerance.
    tol = dict(atol=2e-2, rtol=2e-2)
    assert jnp.allclose(out, ref_out, **tol), float(jnp.max(jnp.abs(out - ref_out)))
    assert jnp.allclose(h_n, ref_h[None, :], **tol), float(jnp.max(jnp.abs(h_n - ref_h[None, :])))
    assert jnp.allclose(c_n, ref_c[None, :], **tol), float(jnp.max(jnp.abs(c_n - ref_c[None, :])))

    print("KERNEL_OK")
</pallas_src>

<mosaic_0001>
module attributes {stable_mosaic.version = 11 : i64} {
  func.func @_lstm_kernel(%arg0: memref<8xi32, #tpu.memory_space<smem>>, %arg1: memref<16x32xf32, #tpu.memory_space<vmem>>, %arg2: memref<32x128xbf16, #tpu.memory_space<vmem>>, %arg3: memref<32x128xbf16, #tpu.memory_space<vmem>>, %arg4: memref<1x128xf32, #tpu.memory_space<vmem>>, %arg5: memref<32x128xbf16, #tpu.memory_space<vmem>>, %arg6: memref<1x128xf32, #tpu.memory_space<vmem>>, %arg7: memref<1x32xf32, #tpu.memory_space<vmem>>, %arg8: memref<1x32xf32, #tpu.memory_space<vmem>>, %arg9: memref<8x128xf32, #tpu.memory_space<vmem>>, %arg10: memref<1x32xf32, #tpu.memory_space<vmem>>, %arg11: memref<1x32xf32, #tpu.memory_space<vmem>>, %arg12: memref<8x32xf32, #tpu.memory_space<vmem>>, %arg13: memref<8x128xf32, #tpu.memory_space<vmem>>, %arg14: memref<8x32xf32, #tpu.memory_space<vmem>>) attributes {dimension_semantics = [], scalar_prefetch = 0 : i64, scratch_operands = 3 : i64, tpu.core_type = #tpu.core_type<tc>} {
    %c0 = arith.constant 0 : index
    %0 = memref.load %arg0[%c0] : memref<8xi32, #tpu.memory_space<smem>>
    %1 = arith.index_cast %0 : i32 to index
    %c0_0 = arith.constant 0 : index
    %2 = vector.load %arg1[%1, %c0_0] : memref<16x32xf32, #tpu.memory_space<vmem>>, vector<1x32xf32>
    %c0_1 = arith.constant 0 : index
    %c0_2 = arith.constant 0 : index
    %3 = vector.load %arg12[%c0_1, %c0_2] : memref<8x32xf32, #tpu.memory_space<vmem>>, vector<1x32xf32>
    tpu.vector_store %arg12[%c0_1, %c0_2], %2 {strides = array<i32>} : memref<8x32xf32, #tpu.memory_space<vmem>>, vector<1x32xf32>,
    %c1 = arith.constant 1 : index
    %4 = memref.load %arg0[%c1] : memref<8xi32, #tpu.memory_space<smem>>
    %5 = arith.index_cast %4 : i32 to index
    %c0_3 = arith.constant 0 : index
    %6 = vector.load %arg1[%5, %c0_3] : memref<16x32xf32, #tpu.memory_space<vmem>>, vector<1x32xf32>
    %c1_4 = arith.constant 1 : index
    %c0_5 = arith.constant 0 : index
    %7 = vector.load %arg12[%c1_4, %c0_5] : memref<8x32xf32, #tpu.memory_space<vmem>>, vector<1x32xf32>
    tpu.vector_store %arg12[%c1_4, %c0_5], %6 {strides = array<i32>} : memref<8x32xf32, #tpu.memory_space<vmem>>, vector<1x32xf32>,
    %c2 = arith.constant 2 : index
    %8 = memref.load %arg0[%c2] : memref<8xi32, #tpu.memory_space<smem>>
    %9 = arith.index_cast %8 : i32 to index
    %c0_6 = arith.constant 0 : index
    %10 = vector.load %arg1[%9, %c0_6] : memref<16x32xf32, #tpu.memory_space<vmem>>, vector<1x32xf32>
    %c2_7 = arith.constant 2 : index
    %c0_8 = arith.constant 0 : index
    %11 = vector.load %arg12[%c2_7, %c0_8] : memref<8x32xf32, #tpu.memory_space<vmem>>, vector<1x32xf32>
    tpu.vector_store %arg12[%c2_7, %c0_8], %10 {strides = array<i32>} : memref<8x32xf32, #tpu.memory_space<vmem>>, vector<1x32xf32>,
    %c3 = arith.constant 3 : index
    %12 = memref.load %arg0[%c3] : memref<8xi32, #tpu.memory_space<smem>>
    %13 = arith.index_cast %12 : i32 to index
    %c0_9 = arith.constant 0 : index
    %14 = vector.load %arg1[%13, %c0_9] : memref<16x32xf32, #tpu.memory_space<vmem>>, vector<1x32xf32>
    %c3_10 = arith.constant 3 : index
    %c0_11 = arith.constant 0 : index
    %15 = vector.load %arg12[%c3_10, %c0_11] : memref<8x32xf32, #tpu.memory_space<vmem>>, vector<1x32xf32>
    tpu.vector_store %arg12[%c3_10, %c0_11], %14 {strides = array<i32>} : memref<8x32xf32, #tpu.memory_space<vmem>>, vector<1x32xf32>,
    %c4 = arith.constant 4 : index
    %16 = memref.load %arg0[%c4] : memref<8xi32, #tpu.memory_space<smem>>
    %17 = arith.index_cast %16 : i32 to index
    %c0_12 = arith.constant 0 : index
    %18 = vector.load %arg1[%17, %c0_12] : memref<16x32xf32, #tpu.memory_space<vmem>>, vector<1x32xf32>
    %c4_13 = arith.constant 4 : index
    %c0_14 = arith.constant 0 : index
    %19 = vector.load %arg12[%c4_13, %c0_14] : memref<8x32xf32, #tpu.memory_space<vmem>>, vector<1x32xf32>
    tpu.vector_store %arg12[%c4_13, %c0_14], %18 {strides = array<i32>} : memref<8x32xf32, #tpu.memory_space<vmem>>, vector<1x32xf32>,
    %c5 = arith.constant 5 : index
    %20 = memref.load %arg0[%c5] : memref<8xi32, #tpu.memory_space<smem>>
    %21 = arith.index_cast %20 : i32 to index
    %c0_15 = arith.constant 0 : index
    %22 = vector.load %arg1[%21, %c0_15] : memref<16x32xf32, #tpu.memory_space<vmem>>, vector<1x32xf32>
    %c5_16 = arith.constant 5 : index
    %c0_17 = arith.constant 0 : index
    %23 = vector.load %arg12[%c5_16, %c0_17] : memref<8x32xf32, #tpu.memory_space<vmem>>, vector<1x32xf32>
    tpu.vector_store %arg12[%c5_16, %c0_17], %22 {strides = array<i32>} : memref<8x32xf32, #tpu.memory_space<vmem>>, vector<1x32xf32>,
    %c6 = arith.constant 6 : index
    %24 = memref.load %arg0[%c6] : memref<8xi32, #tpu.memory_space<smem>>
    %25 = arith.index_cast %24 : i32 to index
    %c0_18 = arith.constant 0 : index
    %26 = vector.load %arg1[%25, %c0_18] : memref<16x32xf32, #tpu.memory_space<vmem>>, vector<1x32xf32>
    %c6_19 = arith.constant 6 : index
    %c0_20 = arith.constant 0 : index
    %27 = vector.load %arg12[%c6_19, %c0_20] : memref<8x32xf32, #tpu.memory_space<vmem>>, vector<1x32xf32>
    tpu.vector_store %arg12[%c6_19, %c0_20], %26 {strides = array<i32>} : memref<8x32xf32, #tpu.memory_space<vmem>>, vector<1x32xf32>,
    %c7 = arith.constant 7 : index
    %28 = memref.load %arg0[%c7] : memref<8xi32, #tpu.memory_space<smem>>
    %29 = arith.index_cast %28 : i32 to index
    %c0_21 = arith.constant 0 : index
    %30 = vector.load %arg1[%29, %c0_21] : memref<16x32xf32, #tpu.memory_space<vmem>>, vector<1x32xf32>
    %c7_22 = arith.constant 7 : index
    %c0_23 = arith.constant 0 : index
    %31 = vector.load %arg12[%c7_22, %c0_23] : memref<8x32xf32, #tpu.memory_space<vmem>>, vector<1x32xf32>
    tpu.vector_store %arg12[%c7_22, %c0_23], %30 {strides = array<i32>} : memref<8x32xf32, #tpu.memory_space<vmem>>, vector<1x32xf32>,
    %c0_24 = arith.constant 0 : index
    %c0_25 = arith.constant 0 : index
    %32 = vector.load %arg12[%c0_24, %c0_25] : memref<8x32xf32, #tpu.memory_space<vmem>>, vector<8x32xf32>
    %33 = arith.truncf %32 : vector<8x32xf32> to vector<8x32xbf16>
    %c0_26 = arith.constant 0 : index
    %c0_27 = arith.constant 0 : index
    %34 = vector.load %arg2[%c0_26, %c0_27] : memref<32x128xbf16, #tpu.memory_space<vmem>>, vector<32x128xbf16>
    %cst = arith.constant dense<0.000000e+00> : vector<8x128xf32>
    %35 = tpu.matmul %33, %34, %cst {dimension_numbers = #tpu.dot_dimension_numbers<[1], [0], [0], [1], [0, 0, 1, 1], [], []>} : vector<8x32xbf16>, vector<32x128xbf16>, vector<8x128xf32> -> vector<8x128xf32>
    %c0_28 = arith.constant 0 : index
    %c0_29 = arith.constant 0 : index
    %36 = vector.load %arg4[%c0_28, %c0_29] : memref<1x128xf32, #tpu.memory_space<vmem>>, vector<1x128xf32>
    %37 = vector.broadcast %36 : vector<1x128xf32> to vector<8x128xf32>
    %38 = arith.addf %35, %37 : vector<8x128xf32>
    %c0_30 = arith.constant 0 : index
    %c0_31 = arith.constant 0 : index
    %39 = vector.load %arg13[%c0_30, %c0_31] : memref<8x128xf32, #tpu.memory_space<vmem>>, vector<8x128xf32>
    tpu.vector_store %arg13[%c0_30, %c0_31], %38 {strides = array<i32>} : memref<8x128xf32, #tpu.memory_space<vmem>>, vector<8x128xf32>,
    %c0_32 = arith.constant 0 : index
    %c0_33 = arith.constant 0 : index
    %40 = vector.load %arg3[%c0_32, %c0_33] : memref<32x128xbf16, #tpu.memory_space<vmem>>, vector<32x128xbf16>
    %c0_34 = arith.constant 0 : index
    %c0_35 = arith.constant 0 : index
    %41 = vector.load %arg7[%c0_34, %c0_35] : memref<1x32xf32, #tpu.memory_space<vmem>>, vector<1x32xf32>
    %c0_36 = arith.constant 0 : index
    %c0_37 = arith.constant 0 : index
    %42 = vector.load %arg8[%c0_36, %c0_37] : memref<1x32xf32, #tpu.memory_space<vmem>>, vector<1x32xf32>
    %c0_38 = arith.constant 0 : index
    %c0_39 = arith.constant 0 : index
    %43 = vector.load %arg13[%c0_38, %c0_39] : memref<8x128xf32, #tpu.memory_space<vmem>>, vector<1x128xf32>
    %44 = arith.truncf %41 : vector<1x32xf32> to vector<1x32xbf16>
    %cst_40 = arith.constant dense<0.000000e+00> : vector<1x128xf32>
    %45 = tpu.matmul %44, %40, %cst_40 {dimension_numbers = #tpu.dot_dimension_numbers<[1], [0], [0], [1], [0, 0, 1, 1], [], []>} : vector<1x32xbf16>, vector<32x128xbf16>, vector<1x128xf32> -> vector<1x128xf32>
    %46 = arith.addf %43, %45 : vector<1x128xf32>
    %47 = arith.negf %46 : vector<1x128xf32>
    %48 = math.exp %47 : vector<1x128xf32>
    %cst_41 = arith.constant 1.000000e+00 : f32
    %49 = vector.broadcast %cst_41 : f32 to vector<1x128xf32>
    %50 = arith.addf %49, %48 : vector<1x128xf32>
    %51 = arith.divf %49, %50 : vector<1x128xf32>
    %52 = math.tanh %46 : vector<1x128xf32>
    %53 = vector.extract_strided_slice %51 {offsets = [0, 0], sizes = [1, 32], strides = [1, 1]} : vector<1x128xf32> to vector<1x32xf32>
    %54 = vector.extract_strided_slice %51 {offsets = [0, 32], sizes = [1, 32], strides = [1, 1]} : vector<1x128xf32> to vector<1x32xf32>
    %55 = vector.extract_strided_slice %52 {offsets = [0, 64], sizes = [1, 32], strides = [1, 1]} : vector<1x128xf32> to vector<1x32xf32>
    %56 = vector.extract_strided_slice %51 {offsets = [0, 96], sizes = [1, 32], strides = [1, 1]} : vector<1x128xf32> to vector<1x32xf32>
    %57 = arith.mulf %54, %42 : vector<1x32xf32>
    %58 = arith.mulf %53, %55 : vector<1x32xf32>
    %59 = arith.addf %57, %58 : vector<1x32xf32>
    %60 = math.tanh %59 : vector<1x32xf32>
    %61 = arith.mulf %56, %60 : vector<1x32xf32>
    %c0_42 = arith.constant 0 : index
    %c0_43 = arith.constant 0 : index
    %62 = vector.load %arg14[%c0_42, %c0_43] : memref<8x32xf32, #tpu.memory_space<vmem>>, vector<1x32xf32>
    tpu.vector_store %arg14[%c0_42, %c0_43], %61 {strides = array<i32>} : memref<8x32xf32, #tpu.memory_space<vmem>>, vector<1x32xf32>,
    %c1_44 = arith.constant 1 : index
    %c0_45 = arith.constant 0 : index
    %63 = vector.load %arg13[%c1_44, %c0_45] : memref<8x128xf32, #tpu.memory_space<vmem>>, vector<1x128xf32>
    %64 = arith.truncf %61 : vector<1x32xf32> to vector<1x32xbf16>
    %cst_46 = arith.constant dense<0.000000e+00> : vector<1x128xf32>
    %65 = tpu.matmul %64, %40, %cst_46 {dimension_numbers = #tpu.dot_dimension_numbers<[1], [0], [0], [1], [0, 0, 1, 1], [], []>} : vector<1x32xbf16>, vector<32x128xbf16>, vector<1x128xf32> -> vector<1x128xf32>
    %66 = arith.addf %63, %65 : vector<1x128xf32>
    %67 = arith.negf %66 : vector<1x128xf32>
    %68 = math.exp %67 : vector<1x128xf32>
    %cst_47 = arith.constant 1.000000e+00 : f32
    %69 = vector.broadcast %cst_47 : f32 to vector<1x128xf32>
    %70 = arith.addf %69, %68 : vector<1x128xf32>
    %71 = arith.divf %69, %70 : vector<1x128xf32>
    %72 = math.tanh %66 : vector<1x128xf32>
    %73 = vector.extract_strided_slice %71 {offsets = [0, 0], sizes = [1, 32], strides = [1, 1]} : vector<1x128xf32> to vector<1x32xf32>
    %74 = vector.extract_strided_slice %71 {offsets = [0, 32], sizes = [1, 32], strides = [1, 1]} : vector<1x128xf32> to vector<1x32xf32>
    %75 = vector.extract_strided_slice %72 {offsets = [0, 64], sizes = [1, 32], strides = [1, 1]} : vector<1x128xf32> to vector<1x32xf32>
    %76 = vector.extract_strided_slice %71 {offsets = [0, 96], sizes = [1, 32], strides = [1, 1]} : vector<1x128xf32> to vector<1x32xf32>
    %77 = arith.mulf %74, %59 : vector<1x32xf32>
    %78 = arith.mulf %73, %75 : vector<1x32xf32>
    %79 = arith.addf %77, %78 : vector<1x32xf32>
    %80 = math.tanh %79 : vector<1x32xf32>
    %81 = arith.mulf %76, %80 : vector<1x32xf32>
    %c1_48 = arith.constant 1 : index
    %c0_49 = arith.constant 0 : index
    %82 = vector.load %arg14[%c1_48, %c0_49] : memref<8x32xf32, #tpu.memory_space<vmem>>, vector<1x32xf32>
    tpu.vector_store %arg14[%c1_48, %c0_49], %81 {strides = array<i32>} : memref<8x32xf32, #tpu.memory_space<vmem>>, vector<1x32xf32>,
    %c2_50 = arith.constant 2 : index
    %c0_51 = arith.constant 0 : index
    %83 = vector.load %arg13[%c2_50, %c0_51] : memref<8x128xf32, #tpu.memory_space<vmem>>, vector<1x128xf32>
    %84 = arith.truncf %81 : vector<1x32xf32> to vector<1x32xbf16>
    %cst_52 = arith.constant dense<0.000000e+00> : vector<1x128xf32>
    %85 = tpu.matmul %84, %40, %cst_52 {dimension_numbers = #tpu.dot_dimension_numbers<[1], [0], [0], [1], [0, 0, 1, 1], [], []>} : vector<1x32xbf16>, vector<32x128xbf16>, vector<1x128xf32> -> vector<1x128xf32>
    %86 = arith.addf %83, %85 : vector<1x128xf32>
    %87 = arith.negf %86 : vector<1x128xf32>
    %88 = math.exp %87 : vector<1x128xf32>
    %cst_53 = arith.constant 1.000000e+00 : f32
    %89 = vector.broadcast %cst_53 : f32 to vector<1x128xf32>
    %90 = arith.addf %89, %88 : vector<1x128xf32>
    %91 = arith.divf %89, %90 : vector<1x128xf32>
    %92 = math.tanh %86 : vector<1x128xf32>
    %93 = vector.extract_strided_slice %91 {offsets = [0, 0], sizes = [1, 32], strides = [1, 1]} : vector<1x128xf32> to vector<1x32xf32>
    %94 = vector.extract_strided_slice %91 {offsets = [0, 32], sizes = [1, 32], strides = [1, 1]} : vector<1x128xf32> to vector<1x32xf32>
    %95 = vector.extract_strided_slice %92 {offsets = [0, 64], sizes = [1, 32], strides = [1, 1]} : vector<1x128xf32> to vector<1x32xf32>
    %96 = vector.extract_strided_slice %91 {offsets = [0, 96], sizes = [1, 32], strides = [1, 1]} : vector<1x128xf32> to vector<1x32xf32>
    %97 = arith.mulf %94, %79 : vector<1x32xf32>
    %98 = arith.mulf %93, %95 : vector<1x32xf32>
    %99 = arith.addf %97, %98 : vector<1x32xf32>
    %100 = math.tanh %99 : vector<1x32xf32>
    %101 = arith.mulf %96, %100 : vector<1x32xf32>
    %c2_54 = arith.constant 2 : index
    %c0_55 = arith.constant 0 : index
    %102 = vector.load %arg14[%c2_54, %c0_55] : memref<8x32xf32, #tpu.memory_space<vmem>>, vector<1x32xf32>
    tpu.vector_store %arg14[%c2_54, %c0_55], %101 {strides = array<i32>} : memref<8x32xf32, #tpu.memory_space<vmem>>, vector<1x32xf32>,
    %c3_56 = arith.constant 3 : index
    %c0_57 = arith.constant 0 : index
    %103 = vector.load %arg13[%c3_56, %c0_57] : memref<8x128xf32, #tpu.memory_space<vmem>>, vector<1x128xf32>
    %104 = arith.truncf %101 : vector<1x32xf32> to vector<1x32xbf16>
    %cst_58 = arith.constant dense<0.000000e+00> : vector<1x128xf32>
    %105 = tpu.matmul %104, %40, %cst_58 {dimension_numbers = #tpu.dot_dimension_numbers<[1], [0], [0], [1], [0, 0, 1, 1], [], []>} : vector<1x32xbf16>, vector<32x128xbf16>, vector<1x128xf32> -> vector<1x128xf32>
    %106 = arith.addf %103, %105 : vector<1x128xf32>
    %107 = arith.negf %106 : vector<1x128xf32>
    %108 = math.exp %107 : vector<1x128xf32>
    %cst_59 = arith.constant 1.000000e+00 : f32
    %109 = vector.broadcast %cst_59 : f32 to vector<1x128xf32>
    %110 = arith.addf %109, %108 : vector<1x128xf32>
    %111 = arith.divf %109, %110 : vector<1x128xf32>
    %112 = math.tanh %106 : vector<1x128xf32>
    %113 = vector.extract_strided_slice %111 {offsets = [0, 0], sizes = [1, 32], strides = [1, 1]} : vector<1x128xf32> to vector<1x32xf32>
    %114 = vector.extract_strided_slice %111 {offsets = [0, 32], sizes = [1, 32], strides = [1, 1]} : vector<1x128xf32> to vector<1x32xf32>
    %115 = vector.extract_strided_slice %112 {offsets = [0, 64], sizes = [1, 32], strides = [1, 1]} : vector<1x128xf32> to vector<1x32xf32>
    %116 = vector.extract_strided_slice %111 {offsets = [0, 96], sizes = [1, 32], strides = [1, 1]} : vector<1x128xf32> to vector<1x32xf32>
    %117 = arith.mulf %114, %99 : vector<1x32xf32>
    %118 = arith.mulf %113, %115 : vector<1x32xf32>
    %119 = arith.addf %117, %118 : vector<1x32xf32>
    %120 = math.tanh %119 : vector<1x32xf32>
    %121 = arith.mulf %116, %120 : vector<1x32xf32>
    %c3_60 = arith.constant 3 : index
    %c0_61 = arith.constant 0 : index
    %122 = vector.load %arg14[%c3_60, %c0_61] : memref<8x32xf32, #tpu.memory_space<vmem>>, vector<1x32xf32>
    tpu.vector_store %arg14[%c3_60, %c0_61], %121 {strides = array<i32>} : memref<8x32xf32, #tpu.memory_space<vmem>>, vector<1x32xf32>,
    %c4_62 = arith.constant 4 : index
    %c0_63 = arith.constant 0 : index
    %123 = vector.load %arg13[%c4_62, %c0_63] : memref<8x128xf32, #tpu.memory_space<vmem>>, vector<1x128xf32>
    %124 = arith.truncf %121 : vector<1x32xf32> to vector<1x32xbf16>
    %cst_64 = arith.constant dense<0.000000e+00> : vector<1x128xf32>
    %125 = tpu.matmul %124, %40, %cst_64 {dimension_numbers = #tpu.dot_dimension_numbers<[1], [0], [0], [1], [0, 0, 1, 1], [], []>} : vector<1x32xbf16>, vector<32x128xbf16>, vector<1x128xf32> -> vector<1x128xf32>
    %126 = arith.addf %123, %125 : vector<1x128xf32>
    %127 = arith.negf %126 : vector<1x128xf32>
    %128 = math.exp %127 : vector<1x128xf32>
    %cst_65 = arith.constant 1.000000e+00 : f32
    %129 = vector.broadcast %cst_65 : f32 to vector<1x128xf32>
    %130 = arith.addf %129, %128 : vector<1x128xf32>
    %131 = arith.divf %129, %130 : vector<1x128xf32>
    %132 = math.tanh %126 : vector<1x128xf32>
    %133 = vector.extract_strided_slice %131 {offsets = [0, 0], sizes = [1, 32], strides = [1, 1]} : vector<1x128xf32> to vector<1x32xf32>
    %134 = vector.extract_strided_slice %131 {offsets = [0, 32], sizes = [1, 32], strides = [1, 1]} : vector<1x128xf32> to vector<1x32xf32>
    %135 = vector.extract_strided_slice %132 {offsets = [0, 64], sizes = [1, 32], strides = [1, 1]} : vector<1x128xf32> to vector<1x32xf32>
    %136 = vector.extract_strided_slice %131 {offsets = [0, 96], sizes = [1, 32], strides = [1, 1]} : vector<1x128xf32> to vector<1x32xf32>
    %137 = arith.mulf %134, %119 : vector<1x32xf32>
    %138 = arith.mulf %133, %135 : vector<1x32xf32>
    %139 = arith.addf %137, %138 : vector<1x32xf32>
    %140 = math.tanh %139 : vector<1x32xf32>
    %141 = arith.mulf %136, %140 : vector<1x32xf32>
    %c4_66 = arith.constant 4 : index
    %c0_67 = arith.constant 0 : index
    %142 = vector.load %arg14[%c4_66, %c0_67] : memref<8x32xf32, #tpu.memory_space<vmem>>, vector<1x32xf32>
    tpu.vector_store %arg14[%c4_66, %c0_67], %141 {strides = array<i32>} : memref<8x32xf32, #tpu.memory_space<vmem>>, vector<1x32xf32>,
    %c5_68 = arith.constant 5 : index
    %c0_69 = arith.constant 0 : index
    %143 = vector.load %arg13[%c5_68, %c0_69] : memref<8x128xf32, #tpu.memory_space<vmem>>, vector<1x128xf32>
    %144 = arith.truncf %141 : vector<1x32xf32> to vector<1x32xbf16>
    %cst_70 = arith.constant dense<0.000000e+00> : vector<1x128xf32>
    %145 = tpu.matmul %144, %40, %cst_70 {dimension_numbers = #tpu.dot_dimension_numbers<[1], [0], [0], [1], [0, 0, 1, 1], [], []>} : vector<1x32xbf16>, vector<32x128xbf16>, vector<1x128xf32> -> vector<1x128xf32>
    %146 = arith.addf %143, %145 : vector<1x128xf32>
    %147 = arith.negf %146 : vector<1x128xf32>
    %148 = math.exp %147 : vector<1x128xf32>
    %cst_71 = arith.constant 1.000000e+00 : f32
    %149 = vector.broadcast %cst_71 : f32 to vector<1x128xf32>
    %150 = arith.addf %149, %148 : vector<1x128xf32>
    %151 = arith.divf %149, %150 : vector<1x128xf32>
    %152 = math.tanh %146 : vector<1x128xf32>
    %153 = vector.extract_strided_slice %151 {offsets = [0, 0], sizes = [1, 32], strides = [1, 1]} : vector<1x128xf32> to vector<1x32xf32>
    %154 = vector.extract_strided_slice %151 {offsets = [0, 32], sizes = [1, 32], strides = [1, 1]} : vector<1x128xf32> to vector<1x32xf32>
    %155 = vector.extract_strided_slice %152 {offsets = [0, 64], sizes = [1, 32], strides = [1, 1]} : vector<1x128xf32> to vector<1x32xf32>
    %156 = vector.extract_strided_slice %151 {offsets = [0, 96], sizes = [1, 32], strides = [1, 1]} : vector<1x128xf32> to vector<1x32xf32>
    %157 = arith.mulf %154, %139 : vector<1x32xf32>
    %158 = arith.mulf %153, %155 : vector<1x32xf32>
    %159 = arith.addf %157, %158 : vector<1x32xf32>
    %160 = math.tanh %159 : vector<1x32xf32>
    %161 = arith.mulf %156, %160 : vector<1x32xf32>
    %c5_72 = arith.constant 5 : index
    %c0_73 = arith.constant 0 : index
    %162 = vector.load %arg14[%c5_72, %c0_73] : memref<8x32xf32, #tpu.memory_space<vmem>>, vector<1x32xf32>
    tpu.vector_store %arg14[%c5_72, %c0_73], %161 {strides = array<i32>} : memref<8x32xf32, #tpu.memory_space<vmem>>, vector<1x32xf32>,
    %c6_74 = arith.constant 6 : index
    %c0_75 = arith.constant 0 : index
    %163 = vector.load %arg13[%c6_74, %c0_75] : memref<8x128xf32, #tpu.memory_space<vmem>>, vector<1x128xf32>
    %164 = arith.truncf %161 : vector<1x32xf32> to vector<1x32xbf16>
    %cst_76 = arith.constant dense<0.000000e+00> : vector<1x128xf32>
    %165 = tpu.matmul %164, %40, %cst_76 {dimension_numbers = #tpu.dot_dimension_numbers<[1], [0], [0], [1], [0, 0, 1, 1], [], []>} : vector<1x32xbf16>, vector<32x128xbf16>, vector<1x128xf32> -> vector<1x128xf32>
    %166 = arith.addf %163, %165 : vector<1x128xf32>
    %167 = arith.negf %166 : vector<1x128xf32>
    %168 = math.exp %167 : vector<1x128xf32>
    %cst_77 = arith.constant 1.000000e+00 : f32
    %169 = vector.broadcast %cst_77 : f32 to vector<1x128xf32>
    %170 = arith.addf %169, %168 : vector<1x128xf32>
    %171 = arith.divf %169, %170 : vector<1x128xf32>
    %172 = math.tanh %166 : vector<1x128xf32>
    %173 = vector.extract_strided_slice %171 {offsets = [0, 0], sizes = [1, 32], strides = [1, 1]} : vector<1x128xf32> to vector<1x32xf32>
    %174 = vector.extract_strided_slice %171 {offsets = [0, 32], sizes = [1, 32], strides = [1, 1]} : vector<1x128xf32> to vector<1x32xf32>
    %175 = vector.extract_strided_slice %172 {offsets = [0, 64], sizes = [1, 32], strides = [1, 1]} : vector<1x128xf32> to vector<1x32xf32>
    %176 = vector.extract_strided_slice %171 {offsets = [0, 96], sizes = [1, 32], strides = [1, 1]} : vector<1x128xf32> to vector<1x32xf32>
    %177 = arith.mulf %174, %159 : vector<1x32xf32>
    %178 = arith.mulf %173, %175 : vector<1x32xf32>
    %179 = arith.addf %177, %178 : vector<1x32xf32>
    %180 = math.tanh %179 : vector<1x32xf32>
    %181 = arith.mulf %176, %180 : vector<1x32xf32>
    %c6_78 = arith.constant 6 : index
    %c0_79 = arith.constant 0 : index
    %182 = vector.load %arg14[%c6_78, %c0_79] : memref<8x32xf32, #tpu.memory_space<vmem>>, vector<1x32xf32>
    tpu.vector_store %arg14[%c6_78, %c0_79], %181 {strides = array<i32>} : memref<8x32xf32, #tpu.memory_space<vmem>>, vector<1x32xf32>,
    %c7_80 = arith.constant 7 : index
    %c0_81 = arith.constant 0 : index
    %183 = vector.load %arg13[%c7_80, %c0_81] : memref<8x128xf32, #tpu.memory_space<vmem>>, vector<1x128xf32>
    %184 = arith.truncf %181 : vector<1x32xf32> to vector<1x32xbf16>
    %cst_82 = arith.constant dense<0.000000e+00> : vector<1x128xf32>
    %185 = tpu.matmul %184, %40, %cst_82 {dimension_numbers = #tpu.dot_dimension_numbers<[1], [0], [0], [1], [0, 0, 1, 1], [], []>} : vector<1x32xbf16>, vector<32x128xbf16>, vector<1x128xf32> -> vector<1x128xf32>
    %186 = arith.addf %183, %185 : vector<1x128xf32>
    %187 = arith.negf %186 : vector<1x128xf32>
    %188 = math.exp %187 : vector<1x128xf32>
    %cst_83 = arith.constant 1.000000e+00 : f32
    %189 = vector.broadcast %cst_83 : f32 to vector<1x128xf32>
    %190 = arith.addf %189, %188 : vector<1x128xf32>
    %191 = arith.divf %189, %190 : vector<1x128xf32>
    %192 = math.tanh %186 : vector<1x128xf32>
    %193 = vector.extract_strided_slice %191 {offsets = [0, 0], sizes = [1, 32], strides = [1, 1]} : vector<1x128xf32> to vector<1x32xf32>
    %194 = vector.extract_strided_slice %191 {offsets = [0, 32], sizes = [1, 32], strides = [1, 1]} : vector<1x128xf32> to vector<1x32xf32>
    %195 = vector.extract_strided_slice %192 {offsets = [0, 64], sizes = [1, 32], strides = [1, 1]} : vector<1x128xf32> to vector<1x32xf32>
    %196 = vector.extract_strided_slice %191 {offsets = [0, 96], sizes = [1, 32], strides = [1, 1]} : vector<1x128xf32> to vector<1x32xf32>
    %197 = arith.mulf %194, %179 : vector<1x32xf32>
    %198 = arith.mulf %193, %195 : vector<1x32xf32>
    %199 = arith.addf %197, %198 : vector<1x32xf32>
    %200 = math.tanh %199 : vector<1x32xf32>
    %201 = arith.mulf %196, %200 : vector<1x32xf32>
    %c7_84 = arith.constant 7 : index
    %c0_85 = arith.constant 0 : index
    %202 = vector.load %arg14[%c7_84, %c0_85] : memref<8x32xf32, #tpu.memory_space<vmem>>, vector<1x32xf32>
    tpu.vector_store %arg14[%c7_84, %c0_85], %201 {strides = array<i32>} : memref<8x32xf32, #tpu.memory_space<vmem>>, vector<1x32xf32>,
    %c0_86 = arith.constant 0 : index
    %c0_87 = arith.constant 0 : index
    %203 = vector.load %arg10[%c0_86, %c0_87] : memref<1x32xf32, #tpu.memory_space<vmem>>, vector<1x32xf32>
    tpu.vector_store %arg10[%c0_86, %c0_87], %201 {strides = array<i32>} : memref<1x32xf32, #tpu.memory_space<vmem>>, vector<1x32xf32>,
    %c0_88 = arith.constant 0 : index
    %c0_89 = arith.constant 0 : index
    %204 = vector.load %arg11[%c0_88, %c0_89] : memref<1x32xf32, #tpu.memory_space<vmem>>, vector<1x32xf32>
    tpu.vector_store %arg11[%c0_88, %c0_89], %199 {strides = array<i32>} : memref<1x32xf32, #tpu.memory_space<vmem>>, vector<1x32xf32>,
    %c0_90 = arith.constant 0 : index
    %c0_91 = arith.constant 0 : index
    %205 = vector.load %arg14[%c0_90, %c0_91] : memref<8x32xf32, #tpu.memory_space<vmem>>, vector<8x32xf32>
    %206 = arith.truncf %205 : vector<8x32xf32> to vector<8x32xbf16>
    %c0_92 = arith.constant 0 : index
    %c0_93 = arith.constant 0 : index
    %207 = vector.load %arg5[%c0_92, %c0_93] : memref<32x128xbf16, #tpu.memory_space<vmem>>, vector<32x128xbf16>
    %cst_94 = arith.constant dense<0.000000e+00> : vector<8x128xf32>
    %208 = tpu.matmul %206, %207, %cst_94 {dimension_numbers = #tpu.dot_dimension_numbers<[1], [0], [0], [1], [0, 0, 1, 1], [], []>} : vector<8x32xbf16>, vector<32x128xbf16>, vector<8x128xf32> -> vector<8x128xf32>
    %c0_95 = arith.constant 0 : index
    %c0_96 = arith.constant 0 : index
    %209 = vector.load %arg6[%c0_95, %c0_96] : memref<1x128xf32, #tpu.memory_space<vmem>>, vector<1x128xf32>
    %210 = vector.broadcast %209 : vector<1x128xf32> to vector<8x128xf32>
    %211 = arith.addf %208, %210 : vector<8x128xf32>
    %cst_97 = arith.constant dense<0xFF800000> : vector<8xf32>
    %212 = vector.multi_reduction <maximumf>, %211, %cst_97 [1] : vector<8x128xf32> to vector<8xf32>
    %213 = vector.shape_cast %212 : vector<8xf32> to vector<8x1xf32>
    %214 = vector.broadcast %213 : vector<8x1xf32> to vector<8x128xf32>
    %215 = arith.subf %211, %214 : vector<8x128xf32>
    %216 = math.exp %215 : vector<8x128xf32>
    %cst_98 = arith.constant dense<0.000000e+00> : vector<8xf32>
    %217 = vector.multi_reduction <add>, %216, %cst_98 [1] : vector<8x128xf32> to vector<8xf32>
    %218 = vector.shape_cast %217 : vector<8xf32> to vector<8x1xf32>
    %219 = math.log %218 : vector<8x1xf32>
    %220 = arith.addf %219, %213 : vector<8x1xf32>
    %221 = vector.broadcast %220 : vector<8x1xf32> to vector<8x128xf32>
    %222 = arith.subf %211, %221 : vector<8x128xf32>
    %c0_99 = arith.constant 0 : index
    %c0_100 = arith.constant 0 : index
    %223 = vector.load %arg9[%c0_99, %c0_100] : memref<8x128xf32, #tpu.memory_space<vmem>>, vector<8x128xf32>
    tpu.vector_store %arg9[%c0_99, %c0_100], %222 {strides = array<i32>} : memref<8x128xf32, #tpu.memory_space<vmem>>, vector<8x128xf32>,
    return
  }
}

</mosaic_0001>

<llo_original>
// kernel: lstmnet_forward.1
$region0: #{lstmnet_forward.1}
  #allocation0 [shape = 'u32[]', space=smem, size = 0x4, offset = 0x4, fixed_abs, tag = 'smem constant byte address 0x4 - core index']
  #allocation1 [shape = 'u32[144,128]{1,0:T(1,128)}', space=vmem, size = 0x12000, scoped, tag = 'internal scratch']
  #allocation2 [shape = 'f32[8,32]{1,0:T(8,128)}', space=vmem, size = 0x1000, scoped, tag = 'scratch operand']
  #allocation3 [shape = 'f32[8,128]{1,0:T(8,128)}', space=vmem, size = 0x1000, scoped, tag = 'scratch operand']
  #allocation4 [shape = 'f32[8,32]{1,0:T(8,128)}', space=vmem, size = 0x1000, scoped, tag = 'scratch operand']
  %s0 = inlined_call_operand.hbm [shape: s32[8], index: 0, kind: input, shape index: {}]
  %s1 = inlined_call_operand.hbm [shape: f32[16,32], index: 1, kind: input, shape index: {}]
  %s2 = inlined_call_operand.vmem [shape: bf16[32,128], index: 2, kind: input, shape index: {}]
  %s3 = inlined_call_operand.hbm [shape: bf16[32,128], index: 3, kind: input, shape index: {}]
  %s4 = inlined_call_operand.vmem [shape: f32[1,128], index: 4, kind: input, shape index: {}]
  %s5 = inlined_call_operand.hbm [shape: bf16[32,128], index: 5, kind: input, shape index: {}]
  %s6 = inlined_call_operand.vmem [shape: f32[1,128], index: 6, kind: input, shape index: {}]
  %s7 = inlined_call_operand.vmem [shape: f32[1,32], index: 7, kind: input, shape index: {}, may-alias: {7,10}]
  %s8 = inlined_call_operand.vmem [shape: f32[1,32], index: 8, kind: input, shape index: {}, may-alias: {8,11}]
  %s9 = inlined_call_operand.hbm [shape: f32[8,128], index: 9, kind: output, shape index: {0}]
  %s10 = inlined_call_operand.vmem [shape: f32[1,32], index: 10, kind: output, shape index: {1}, may-alias: {7,10}]
  %s11 = inlined_call_operand.vmem [shape: f32[1,32], index: 11, kind: output, shape index: {2}, may-alias: {8,11}]
  %12 = xla_tuple %s9, %s10, %s11
  %s13 = sld [smem:[#allocation0]]
  $region78: #{lstmnet_forward.1} parent=0
    _
  %s15 = ssub.s32 1, %s13
  %s16 = scalar_select 0, %s15, %s13
  $region1: #{lstmnet_forward.1} parent=0
    #allocation5 [shape = 'u8[512]{0}', space=smem, size = 0x200, scoped, tag = 'input window, operand 0, single buffered']
    #allocation6 [shape = 's32[1]{0}', space=sflag, size = 0x4, scoped, tag = 'scoped memory for lstmnet_forward.1']
    #allocation7 [shape = 's32[1]{0}', space=sflag, size = 0x4, scoped, tag = 'scoped memory for lstmnet_forward.1']
    #allocation8 [shape = 's32[1]{0}', space=sflag, size = 0x4, scoped, tag = 'scoped memory for lstmnet_forward.1']
    #allocation9 [shape = 'u8[8192]{0}', space=vmem, size = 0x2000, scoped, tag = 'input window, operand 1, single buffered']
    #allocation10 [shape = 'u8[8192]{0}', space=vmem, size = 0x2000, scoped, tag = 'input window, operand 3, single buffered']
    #allocation11 [shape = 's32[1]{0}', space=sflag, size = 0x4, scoped, tag = 'scoped memory for lstmnet_forward.1']
    #allocation12 [shape = 'u8[8192]{0}', space=vmem, size = 0x2000, scoped, tag = 'input window, operand 5, single buffered']
    #allocation13 [shape = 'u8[4096]{0}', space=vmem, size = 0x1000, scoped, tag = 'output window, operand 0, single buffered']
    %17 = vsyncpa [#allocation8], 0
    %18 = vsyncpa [#allocation6], 0
    %19 = vsyncpa [#allocation11], 0
    %20 = vsyncpa [#allocation7], 0
    // Predicated region
    $region2: #{lstmnet_forward.1} parent=1 // pred_check
      _
    $region3: #{lstmnet_forward.1} parent=1 // pred_check_branch
      %22 = sbr.rel (0) target = $region5
    $region4: #{lstmnet_forward.1} parent=1 // pred_region
      %s24 = ssub.s32 16, 16
      %25 = vsyncadd [#allocation8], %s24
      %28 = dma.hbm_to_smem %s0, 16, [#allocation5], [#allocation8]
    $region5: #{lstmnet_forward.1} parent=1 // pred_fallthru
      _
    // Predicated region
    $region6: #{lstmnet_forward.1} parent=1 // pred_check
      _
    $region7: #{lstmnet_forward.1} parent=1 // pred_check_branch
      %30 = sbr.rel (0) target = $region9
    $region8: #{lstmnet_forward.1} parent=1 // pred_region
      %s32 = ssub.s32 256, 256
      %33 = vsyncadd [#allocation6], %s32
      %s34 = sshll.u32 [#allocation9], 4
      %s35 = int_to_ptr.vmem [resolvable:$true] %s34
      %40 = dma.hbm_to_vmem [thread:$0]  %s1, 256, %s35, [#allocation6], 128, 128, 8
    $region9: #{lstmnet_forward.1} parent=1 // pred_fallthru
      _
    // Predicated region
    $region10: #{lstmnet_forward.1} parent=1 // pred_check
      _
    $region11: #{lstmnet_forward.1} parent=1 // pred_check_branch
      %42 = sbr.rel (0) target = $region13
    $region12: #{lstmnet_forward.1} parent=1 // pred_region
      _
    $region13: #{lstmnet_forward.1} parent=1 // pred_fallthru
      _
    // Predicated region
    $region14: #{lstmnet_forward.1} parent=1 // pred_check
      _
    $region15: #{lstmnet_forward.1} parent=1 // pred_check_branch
      %44 = sbr.rel (0) target = $region17
    $region16: #{lstmnet_forward.1} parent=1 // pred_region
      %s46 = ssub.s32 256, 256
      %47 = vsyncadd [#allocation11], %s46
      %s48 = sshll.u32 [#allocation10], 4
      %s49 = int_to_ptr.vmem [resolvable:$true] %s48
      %54 = dma.hbm_to_vmem [thread:$0]  %s3, 256, %s49, [#allocation11], 64, 64, 4
    $region17: #{lstmnet_forward.1} parent=1 // pred_fallthru
      _
    // Predicated region
    $region18: #{lstmnet_forward.1} parent=1 // pred_check
      _
    $region19: #{lstmnet_forward.1} parent=1 // pred_check_branch
      %56 = sbr.rel (0) target = $region21
    $region20: #{lstmnet_forward.1} parent=1 // pred_region
      _
    $region21: #{lstmnet_forward.1} parent=1 // pred_fallthru
      _
    // Predicated region
    $region22: #{lstmnet_forward.1} parent=1 // pred_check
      _
    $region23: #{lstmnet_forward.1} parent=1 // pred_check_branch
      %58 = sbr.rel (0) target = $region25
    $region24: #{lstmnet_forward.1} parent=1 // pred_region
      %s60 = ssub.s32 256, 256
      %61 = vsyncadd [#allocation11], %s60
      %s62 = sshll.u32 [#allocation12], 4
      %s63 = int_to_ptr.vmem [resolvable:$true] %s62
      %68 = dma.hbm_to_vmem [thread:$0]  %s5, 256, %s63, [#allocation11], 64, 64, 4
    $region25: #{lstmnet_forward.1} parent=1 // pred_fallthru
      _
    // Predicated region
    $region26: #{lstmnet_forward.1} parent=1 // pred_check
      _
    $region27: #{lstmnet_forward.1} parent=1 // pred_check_branch
      %70 = sbr.rel (0) target = $region29
    $region28: #{lstmnet_forward.1} parent=1 // pred_region
      _
    $region29: #{lstmnet_forward.1} parent=1 // pred_fallthru
      _
    // Predicated region
    $region30: #{lstmnet_forward.1} parent=1 // pred_check
      _
    $region31: #{lstmnet_forward.1} parent=1 // pred_check_branch
      %72 = sbr.rel (0) target = $region33
    $region32: #{lstmnet_forward.1} parent=1 // pred_region
      _
    $region33: #{lstmnet_forward.1} parent=1 // pred_fallthru
      _
    // Predicated region
    $region34: #{lstmnet_forward.1} parent=1 // pred_check
      _
    $region35: #{lstmnet_forward.1} parent=1 // pred_check_branch
      %74 = sbr.rel (0) target = $region37
    $region36: #{lstmnet_forward.1} parent=1 // pred_region
      _
    $region37: #{lstmnet_forward.1} parent=1 // pred_fallthru
      _
    // Predicated region
    $region38: #{lstmnet_forward.1} parent=1 // pred_check
      _
    $region39: #{lstmnet_forward.1} parent=1 // pred_check_branch
      %76 = sbr.rel (0) target = $region41
    $region40: #{lstmnet_forward.1} parent=1 // pred_region
      %77 = dma.done [#allocation8], 16
    $region41: #{lstmnet_forward.1} parent=1 // pred_fallthru
      _
    // Predicated region
    $region42: #{lstmnet_forward.1} parent=1 // pred_check
      _
    $region43: #{lstmnet_forward.1} parent=1 // pred_check_branch
      %79 = sbr.rel (0) target = $region45
    $region44: #{lstmnet_forward.1} parent=1 // pred_region
      %80 = dma.done [#allocation6], 256
    $region45: #{lstmnet_forward.1} parent=1 // pred_fallthru
      _
    // Predicated region
    $region46: #{lstmnet_forward.1} parent=1 // pred_check
      _
    $region47: #{lstmnet_forward.1} parent=1 // pred_check_branch
      %82 = sbr.rel (0) target = $region49
    $region48: #{lstmnet_forward.1} parent=1 // pred_region
      %83 = dma.done [#allocation11], 256
    $region49: #{lstmnet_forward.1} parent=1 // pred_fallthru
      _
    // Predicated region
    $region50: #{lstmnet_forward.1} parent=1 // pred_check
      _
    $region51: #{lstmnet_forward.1} parent=1 // pred_check_branch
      %85 = sbr.rel (0) target = $region53
    $region52: #{lstmnet_forward.1} parent=1 // pred_region
      %86 = dma.done [#allocation11], 256
    $region53: #{lstmnet_forward.1} parent=1 // pred_fallthru
      _
    %87 = sfence
    %s89 = sld [smem:[#allocation5]]
    %s90 = scalar_lea.vmem [#allocation9], %s89
    %v91 = vld [vmem:[%s90] sm:$0x1]
    %vm92 = vcmask 253952
    %93 = vst.msk [vmem:[#allocation2] sm:$0x1] %vm92, %v91
    %s94 = sld [smem:[#allocation5 + $0x1]]
    %s95 = scalar_lea.vmem [#allocation9], %s94
    %v96 = vld [vmem:[%s95] sm:$0x1]
    %97 = vst.msk [vmem:[#allocation2 + $0x1] sm:$0x1] %vm92, %v96
    %s98 = sld [smem:[#allocation5 + $0x2]]
    %s99 = scalar_lea.vmem [#allocation9], %s98
    %v100 = vld [vmem:[%s99] sm:$0x1]
    %101 = vst.msk [vmem:[#allocation2 + $0x2] sm:$0x1] %vm92, %v100
    %s102 = sld [smem:[#allocation5 + $0x3]]
    %s103 = scalar_lea.vmem [#allocation9], %s102
    %v104 = vld [vmem:[%s103] sm:$0x1]
    %105 = vst.msk [vmem:[#allocation2 + $0x3] sm:$0x1] %vm92, %v104
    %s106 = sld [smem:[#allocation5 + $0x4]]
    %s107 = scalar_lea.vmem [#allocation9], %s106
    %v108 = vld [vmem:[%s107] sm:$0x1]
    %109 = vst.msk [vmem:[#allocation2 + $0x4] sm:$0x1] %vm92, %v108
    %s110 = sld [smem:[#allocation5 + $0x5]]
    %s111 = scalar_lea.vmem [#allocation9], %s110
    %v112 = vld [vmem:[%s111] sm:$0x1]
    %113 = vst.msk [vmem:[#allocation2 + $0x5] sm:$0x1] %vm92, %v112
    %s114 = sld [smem:[#allocation5 + $0x6]]
    %s115 = scalar_lea.vmem [#allocation9], %s114
    %v116 = vld [vmem:[%s115] sm:$0x1]
    %117 = vst.msk [vmem:[#allocation2 + $0x6] sm:$0x1] %vm92, %v116
    %s118 = sld [smem:[#allocation5 + $0x7]]
    %s119 = scalar_lea.vmem [#allocation9], %s118
    %v120 = vld [vmem:[%s119] sm:$0x1]
    %121 = vst.msk [vmem:[#allocation2 + $0x7] sm:$0x1] %vm92, %v120
    %v122 = vld [vmem:[#allocation2] sm:$0xff]
    %v123 = vpack.c.bf16 %v122, %v122
    %v124 = vld [vmem:[%s2] sm:$0xf]
    %v125 = vld [vmem:[%s2 + $0x4] sm:$0xf]
    %v126 = vld [vmem:[%s2 + $0x8] sm:$0xf]
    %v127 = vld [vmem:[%s2 + $0xc] sm:$0xf]
    %v128 = vld [vmem:[%s4] sm:$0x1]
    %v130 = vlaneseq
    %v131 = vshrl.u32 %v130, 7
    %v132 = vsub.s32 0, %v131
    %v133 = vrot.slane %v128, %v132
    %v139 = vunpack.c.l.b16 %v124
    %v140 = vunpack.c.l.b16 %v125
    %v141 = vunpack.c.l.b16 %v126
    %v142 = vunpack.c.l.b16 %v127
    %v143 = vpack.c.b16 %v140, %v139
    %v144 = vpack.c.b16 %v142, %v141
    %vm147 = vcmask 261120
    %v149 = vsel %vm147, %v123, 0
    %151 = vmatprep.subr.bf16.mxu0 0
    %152 = vmatpush1.bf16.msra.mxu0 %v143
    %153 = vmatprep.subr.bf16.mxu0 0
    %154 = vmatpush1.bf16.msra.mxu0 %v144
    %155 = vmatprep.subr.bf16.mxu0 0
    %156 = vmatpush1.bf16.msra.mxu0 0
    %157 = vmatprep.subr.bf16.mxu0 0
    %158 = vmatpush1.bf16.msra.mxu0 0
    %159 = vmatprep.subr.bf16.mxu0 0
    %160 = vmatpush1.bf16.msra.mxu0 0
    %161 = vmatprep.subr.bf16.mxu0 0
    %162 = vmatpush1.bf16.msra.mxu0 0
    %163 = vmatprep.subr.bf16.mxu0 0
    %164 = vmatpush1.bf16.msra.mxu0 0
    %165 = vmatprep.subr.bf16.mxu0 0
    %166 = vmatpush1.bf16.msra.mxu0 0
    %167 = vmatprep.subr.bf16.mxu0 0
    %168 = vmatpush1.bf16.msra.mxu0 0
    %169 = vmatprep.subr.bf16.mxu0 0
    %170 = vmatpush1.bf16.msra.mxu0 0
    %171 = vmatprep.subr.bf16.mxu0 0
    %172 = vmatpush1.bf16.msra.mxu0 0
    %173 = vmatprep.subr.bf16.mxu0 0
    %174 = vmatpush1.bf16.msra.mxu0 0
    %175 = vmatprep.subr.bf16.mxu0 0
    %176 = vmatpush1.bf16.msra.mxu0 0
    %177 = vmatprep.subr.bf16.mxu0 0
    %178 = vmatpush1.bf16.msra.mxu0 0
    %179 = vmatprep.subr.bf16.mxu0 0
    %180 = vmatpush1.bf16.msra.mxu0 0
    %181 = vmatprep.subr.bf16.mxu0 0
    %182 = vmatpush1.bf16.msra.mxu0 0
    %183 = vmatprep.mubr.bf16.mxu0 0
    %184 = vmatmul.mubr.bf16.gmra.mrb[0].mxu0 %v149
    %v185 = vpop.f32.mrb[0].mxu0
    %v186 = vadd.f32 %v133, %v185
    %v187 = vpop.f32.mrb[0].mxu0
    %v188 = vpop.f32.mrb[0].mxu0
    %v189 = vpop.f32.mrb[0].mxu0
    %190 = vdwg.mxu0
    %191 = vst [vmem:[#allocation3] sm:$0xff] %v186
    %v192 = vld [vmem:[#allocation10] sm:$0xf]
    %v193 = vld [vmem:[#allocation10 + $0x4] sm:$0xf]
    %v194 = vld [vmem:[#allocation10 + $0x8] sm:$0xf]
    %v195 = vld [vmem:[#allocation10 + $0xc] sm:$0xf]
    %v196 = vld [vmem:[%s7] sm:$0x1]
    %v197 = vld [vmem:[%s8] sm:$0x1]
    %v198 = vld [vmem:[#allocation3] sm:$0x1]
    %v199 = vpack.c.bf16 %v196, %v196
    %v204 = vunpack.c.l.b16 %v192
    %v205 = vunpack.c.l.b16 %v193
    %v206 = vunpack.c.l.b16 %v194
    %v207 = vunpack.c.l.b16 %v195
    %v208 = vpack.c.b16 %v205, %v204
    %v209 = vpack.c.b16 %v207, %v206
    %v213 = vsel %vm147, %v199, 0
    %215 = vmatprep.subr.bf16.mxu0 0
    %216 = vmatpush1.bf16.msra.mxu0 %v208
    %217 = vmatprep.subr.bf16.mxu0 0
    %218 = vmatpush1.bf16.msra.mxu0 %v209
    %219 = vmatprep.subr.bf16.mxu0 0
    %220 = vmatpush1.bf16.msra.mxu0 0
    %221 = vmatprep.subr.bf16.mxu0 0
    %222 = vmatpush1.bf16.msra.mxu0 0
    %223 = vmatprep.subr.bf16.mxu0 0
    %224 = vmatpush1.bf16.msra.mxu0 0
    %225 = vmatprep.subr.bf16.mxu0 0
    %226 = vmatpush1.bf16.msra.mxu0 0
    %227 = vmatprep.subr.bf16.mxu0 0
    %228 = vmatpush1.bf16.msra.mxu0 0
    %229 = vmatprep.subr.bf16.mxu0 0
    %230 = vmatpush1.bf16.msra.mxu0 0
    %231 = vmatprep.subr.bf16.mxu0 0
    %232 = vmatpush1.bf16.msra.mxu0 0
    %233 = vmatprep.subr.bf16.mxu0 0
    %234 = vmatpush1.bf16.msra.mxu0 0
    %235 = vmatprep.subr.bf16.mxu0 0
    %236 = vmatpush1.bf16.msra.mxu0 0
    %237 = vmatprep.subr.bf16.mxu0 0
    %238 = vmatpush1.bf16.msra.mxu0 0
    %239 = vmatprep.subr.bf16.mxu0 0
    %240 = vmatpush1.bf16.msra.mxu0 0
    %241 = vmatprep.subr.bf16.mxu0 0
    %242 = vmatpush1.bf16.msra.mxu0 0
    %243 = vmatprep.subr.bf16.mxu0 0
    %244 = vmatpush1.bf16.msra.mxu0 0
    %245 = vmatprep.subr.bf16.mxu0 0
    %246 = vmatpush1.bf16.msra.mxu0 0
    %247 = vmatprep.mubr.bf16.mxu0 0
    %248 = vmatmul.mubr.bf16.gmra.mrb[0].mxu0 %v213
    %v249 = vpop.f32.mrb[0].mxu0
    %v250 = vadd.f32 0.0, %v249
    %v251 = vpop.f32.mrb[0].mxu0
    %v252 = vpop.f32.mrb[0].mxu0
    %v253 = vpop.f32.mrb[0].mxu0
    %254 = vdwg.mxu0
    %v255 = vadd.f32 %v198, %v250
    %v256 = vxor.u32 %v255, 2147483648
    %v257 = vmul.f32 %v256, 1.442695
    %v258 = vpow.pop %v257
    %v259 = vadd.f32 %v258, 1.0
    %v260 = vrcp.pop %v259
    %v261 = vmul.f32 1.0, %v260
    %v262 = vtanh.pop %v255
    %v264 = vlaneseq
    %v265 = vshrl.u32 %v264, 7
    %v266 = vsub.s32 0, %v265
    %v267 = vrot.slane %v197, %v266
    %268 = vrot.lane.b32.xlu0 %v267, 32
    %v269 = vpop.permute.xlu0 %268
    %v271 = vmul.f32 %v261, %v269
    %273 = vrot.lane.b32.xlu0 %v262, 64
    %v274 = vpop.permute.xlu0 %273
    %v276 = vmul.f32 %v261, %v274
    %278 = vrot.lane.b32.xlu0 %v276, 32
    %v279 = vpop.permute.xlu0 %278
    %v281 = vadd.f32 %v271, %v279
    %v282 = vtanh.pop %v281
    %284 = vrot.lane.b32.xlu0 %v282, 64
    %v285 = vpop.permute.xlu0 %284
    %v287 = vmul.f32 %v261, %v285
    %289 = vrot.lane.b32.xlu0 %v287, 32
    %v290 = vpop.permute.xlu0 %289
    %292 = vst.msk [vmem:[#allocation4] sm:$0x1] %vm92, %v290
    %v293 = vld [vmem:[#allocation3 + $0x1] sm:$0x1]
    %v294 = vpack.c.bf16 %v287, %v287
    %296 = vrot.lane.b32.xlu0 %v294, 32
    %v297 = vpop.permute.xlu0 %296
    %v299 = vsel %vm147, %v297, 0
    %301 = vmatprep.subr.bf16.mxu0 0
    %302 = vmatpush1.bf16.msra.mxu0 %v208
    %303 = vmatprep.subr.bf16.mxu0 0
    %304 = vmatpush1.bf16.msra.mxu0 %v209
    %305 = vmatprep.subr.bf16.mxu0 0
    %306 = vmatpush1.bf16.msra.mxu0 0
    %307 = vmatprep.subr.bf16.mxu0 0
    %308 = vmatpush1.bf16.msra.mxu0 0
    %309 = vmatprep.subr.bf16.mxu0 0
    %310 = vmatpush1.bf16.msra.mxu0 0
    %311 = vmatprep.subr.bf16.mxu0 0
    %312 = vmatpush1.bf16.msra.mxu0 0
    %313 = vmatprep.subr.bf16.mxu0 0
    %314 = vmatpush1.bf16.msra.mxu0 0
    %315 = vmatprep.subr.bf16.mxu0 0
    %316 = vmatpush1.bf16.msra.mxu0 0
    %317 = vmatprep.subr.bf16.mxu0 0
    %318 = vmatpush1.bf16.msra.mxu0 0
    %319 = vmatprep.subr.bf16.mxu0 0
    %320 = vmatpush1.bf16.msra.mxu0 0
    %321 = vmatprep.subr.bf16.mxu0 0
    %322 = vmatpush1.bf16.msra.mxu0 0
    %323 = vmatprep.subr.bf16.mxu0 0
    %324 = vmatpush1.bf16.msra.mxu0 0
    %325 = vmatprep.subr.bf16.mxu0 0
    %326 = vmatpush1.bf16.msra.mxu0 0
    %327 = vmatprep.subr.bf16.mxu0 0
    %328 = vmatpush1.bf16.msra.mxu0 0
    %329 = vmatprep.subr.bf16.mxu0 0
    %330 = vmatpush1.bf16.msra.mxu0 0
    %331 = vmatprep.subr.bf16.mxu0 0
    %332 = vmatpush1.bf16.msra.mxu0 0
    %333 = vmatprep.mubr.bf16.mxu0 0
    %334 = vmatmul.mubr.bf16.gmra.mrb[0].mxu0 %v299
    %v335 = vpop.f32.mrb[0].mxu0
    %v336 = vadd.f32 0.0, %v335
    %v337 = vpop.f32.mrb[0].mxu0
    %v338 = vpop.f32.mrb[0].mxu0
    %v339 = vpop.f32.mrb[0].mxu0
    %340 = vdwg.mxu0
    %v341 = vadd.f32 %v293, %v336
    %v342 = vxor.u32 %v341, 2147483648
    %v343 = vmul.f32 %v342, 1.442695
    %v344 = vpow.pop %v343
    %v345 = vadd.f32 %v344, 1.0
    %v346 = vrcp.pop %v345
    %v347 = vmul.f32 1.0, %v346
    %v348 = vtanh.pop %v341
    %v349 = vmul.f32 %v347, %v281
    %351 = vrot.lane.b32.xlu0 %v348, 64
    %v352 = vpop.permute.xlu0 %351
    %v354 = vmul.f32 %v347, %v352
    %356 = vrot.lane.b32.xlu0 %v354, 32
    %v357 = vpop.permute.xlu0 %356
    %v359 = vadd.f32 %v349, %v357
    %v360 = vtanh.pop %v359
    %362 = vrot.lane.b32.xlu0 %v360, 64
    %v363 = vpop.permute.xlu0 %362
    %v365 = vmul.f32 %v347, %v363
    %367 = vrot.lane.b32.xlu0 %v365, 32
    %v368 = vpop.permute.xlu0 %367
    %370 = vst.msk [vmem:[#allocation4 + $0x1] sm:$0x1] %vm92, %v368
    %v371 = vld [vmem:[#allocation3 + $0x2] sm:$0x1]
    %v372 = vpack.c.bf16 %v365, %v365
    %374 = vrot.lane.b32.xlu0 %v372, 32
    %v375 = vpop.permute.xlu0 %374
    %v377 = vsel %vm147, %v375, 0
    %379 = vmatprep.subr.bf16.mxu0 0
    %380 = vmatpush1.bf16.msra.mxu0 %v208
    %381 = vmatprep.subr.bf16.mxu0 0
    %382 = vmatpush1.bf16.msra.mxu0 %v209
    %383 = vmatprep.subr.bf16.mxu0 0
    %384 = vmatpush1.bf16.msra.mxu0 0
    %385 = vmatprep.subr.bf16.mxu0 0
    %386 = vmatpush1.bf16.msra.mxu0 0
    %387 = vmatprep.subr.bf16.mxu0 0
    %388 = vmatpush1.bf16.msra.mxu0 0
    %389 = vmatprep.subr.bf16.mxu0 0
    %390 = vmatpush1.bf16.msra.mxu0 0
    %391 = vmatprep.subr.bf16.mxu0 0
    %392 = vmatpush1.bf16.msra.mxu0 0
    %393 = vmatprep.subr.bf16.mxu0 0
    %394 = vmatpush1.bf16.msra.mxu0 0
    %395 = vmatprep.subr.bf16.mxu0 0
    %396 = vmatpush1.bf16.msra.mxu0 0
    %397 = vmatprep.subr.bf16.mxu0 0
    %398 = vmatpush1.bf16.msra.mxu0 0
    %399 = vmatprep.subr.bf16.mxu0 0
    %400 = vmatpush1.bf16.msra.mxu0 0
    %401 = vmatprep.subr.bf16.mxu0 0
    %402 = vmatpush1.bf16.msra.mxu0 0
    %403 = vmatprep.subr.bf16.mxu0 0
    %404 = vmatpush1.bf16.msra.mxu0 0
    %405 = vmatprep.subr.bf16.mxu0 0
    %406 = vmatpush1.bf16.msra.mxu0 0
    %407 = vmatprep.subr.bf16.mxu0 0
    %408 = vmatpush1.bf16.msra.mxu0 0
    %409 = vmatprep.subr.bf16.mxu0 0
    %410 = vmatpush1.bf16.msra.mxu0 0
    %411 = vmatprep.mubr.bf16.mxu0 0
    %412 = vmatmul.mubr.bf16.gmra.mrb[0].mxu0 %v377
    %v413 = vpop.f32.mrb[0].mxu0
    %v414 = vadd.f32 0.0, %v413
    %v415 = vpop.f32.mrb[0].mxu0
    %v416 = vpop.f32.mrb[0].mxu0
    %v417 = vpop.f32.mrb[0].mxu0
    %418 = vdwg.mxu0
    %v419 = vadd.f32 %v371, %v414
    %v420 = vxor.u32 %v419, 2147483648
    %v421 = vmul.f32 %v420, 1.442695
    %v422 = vpow.pop %v421
    %v423 = vadd.f32 %v422, 1.0
    %v424 = vrcp.pop %v423
    %v425 = vmul.f32 1.0, %v424
    %v426 = vtanh.pop %v419
    %v427 = vmul.f32 %v425, %v359
    %429 = vrot.lane.b32.xlu0 %v426, 64
    %v430 = vpop.permute.xlu0 %429
    %v432 = vmul.f32 %v425, %v430
    %434 = vrot.lane.b32.xlu0 %v432, 32
    %v435 = vpop.permute.xlu0 %434
    %v437 = vadd.f32 %v427, %v435
    %v438 = vtanh.pop %v437
    %440 = vrot.lane.b32.xlu0 %v438, 64
    %v441 = vpop.permute.xlu0 %440
    %v443 = vmul.f32 %v425, %v441
    %445 = vrot.lane.b32.xlu0 %v443, 32
    %v446 = vpop.permute.xlu0 %445
    %448 = vst.msk [vmem:[#allocation4 + $0x2] sm:$0x1] %vm92, %v446
    %v449 = vld [vmem:[#allocation3 + $0x3] sm:$0x1]
    %v450 = vpack.c.bf16 %v443, %v443
    %452 = vrot.lane.b32.xlu0 %v450, 32
    %v453 = vpop.permute.xlu0 %452
    %v455 = vsel %vm147, %v453, 0
    %457 = vmatprep.subr.bf16.mxu0 0
    %458 = vmatpush1.bf16.msra.mxu0 %v208
    %459 = vmatprep.subr.bf16.mxu0 0
    %460 = vmatpush1.bf16.msra.mxu0 %v209
    %461 = vmatprep.subr.bf16.mxu0 0
    %462 = vmatpush1.bf16.msra.mxu0 0
    %463 = vmatprep.subr.bf16.mxu0 0
    %464 = vmatpush1.bf16.msra.mxu0 0
    %465 = vmatprep.subr.bf16.mxu0 0
    %466 = vmatpush1.bf16.msra.mxu0 0
    %467 = vmatprep.subr.bf16.mxu0 0
    %468 = vmatpush1.bf16.msra.mxu0 0
    %469 = vmatprep.subr.bf16.mxu0 0
    %470 = vmatpush1.bf16.msra.mxu0 0
    %471 = vmatprep.subr.bf16.mxu0 0
    %472 = vmatpush1.bf16.msra.mxu0 0
    %473 = vmatprep.subr.bf16.mxu0 0
    %474 = vmatpush1.bf16.msra.mxu0 0
    %475 = vmatprep.subr.bf16.mxu0 0
    %476 = vmatpush1.bf16.msra.mxu0 0
    %477 = vmatprep.subr.bf16.mxu0 0
    %478 = vmatpush1.bf16.msra.mxu0 0
    %479 = vmatprep.subr.bf16.mxu0 0
    %480 = vmatpush1.bf16.msra.mxu0 0
    %481 = vmatprep.subr.bf16.mxu0 0
    %482 = vmatpush1.bf16.msra.mxu0 0
    %483 = vmatprep.subr.bf16.mxu0 0
    %484 = vmatpush1.bf16.msra.mxu0 0
    %485 = vmatprep.subr.bf16.mxu0 0
    %486 = vmatpush1.bf16.msra.mxu0 0
    %487 = vmatprep.subr.bf16.mxu0 0
    %488 = vmatpush1.bf16.msra.mxu0 0
    %489 = vmatprep.mubr.bf16.mxu0 0
    %490 = vmatmul.mubr.bf16.gmra.mrb[0].mxu0 %v455
    %v491 = vpop.f32.mrb[0].mxu0
    %v492 = vadd.f32 0.0, %v491
    %v493 = vpop.f32.mrb[0].mxu0
    %v494 = vpop.f32.mrb[0].mxu0
    %v495 = vpop.f32.mrb[0].mxu0
    %496 = vdwg.mxu0
    %v497 = vadd.f32 %v449, %v492
    %v498 = vxor.u32 %v497, 2147483648
    %v499 = vmul.f32 %v498, 1.442695
    %v500 = vpow.pop %v499
    %v501 = vadd.f32 %v500, 1.0
    %v502 = vrcp.pop %v501
    %v503 = vmul.f32 1.0, %v502
    %v504 = vtanh.pop %v497
    %v505 = vmul.f32 %v503, %v437
    %507 = vrot.lane.b32.xlu0 %v504, 64
    %v508 = vpop.permute.xlu0 %507
    %v510 = vmul.f32 %v503, %v508
    %512 = vrot.lane.b32.xlu0 %v510, 32
    %v513 = vpop.permute.xlu0 %512
    %v515 = vadd.f32 %v505, %v513
    %v516 = vtanh.pop %v515
    %518 = vrot.lane.b32.xlu0 %v516, 64
    %v519 = vpop.permute.xlu0 %518
    %v521 = vmul.f32 %v503, %v519
    %523 = vrot.lane.b32.xlu0 %v521, 32
    %v524 = vpop.permute.xlu0 %523
    %526 = vst.msk [vmem:[#allocation4 + $0x3] sm:$0x1] %vm92, %v524
    %v527 = vld [vmem:[#allocation3 + $0x4] sm:$0x1]
    %v528 = vpack.c.bf16 %v521, %v521
    %530 = vrot.lane.b32.xlu0 %v528, 32
    %v531 = vpop.permute.xlu0 %530
    %v533 = vsel %vm147, %v531, 0
    %535 = vmatprep.subr.bf16.mxu0 0
    %536 = vmatpush1.bf16.msra.mxu0 %v208
    %537 = vmatprep.subr.bf16.mxu0 0
    %538 = vmatpush1.bf16.msra.mxu0 %v209
    %539 = vmatprep.subr.bf16.mxu0 0
    %540 = vmatpush1.bf16.msra.mxu0 0
    %541 = vmatprep.subr.bf16.mxu0 0
    %542 = vmatpush1.bf16.msra.mxu0 0
    %543 = vmatprep.subr.bf16.mxu0 0
    %544 = vmatpush1.bf16.msra.mxu0 0
    %545 = vmatprep.subr.bf16.mxu0 0
    %546 = vmatpush1.bf16.msra.mxu0 0
    %547 = vmatprep.subr.bf16.mxu0 0
    %548 = vmatpush1.bf16.msra.mxu0 0
    %549 = vmatprep.subr.bf16.mxu0 0
    %550 = vmatpush1.bf16.msra.mxu0 0
    %551 = vmatprep.subr.bf16.mxu0 0
    %552 = vmatpush1.bf16.msra.mxu0 0
    %553 = vmatprep.subr.bf16.mxu0 0
    %554 = vmatpush1.bf16.msra.mxu0 0
    %555 = vmatprep.subr.bf16.mxu0 0
    %556 = vmatpush1.bf16.msra.mxu0 0
    %557 = vmatprep.subr.bf16.mxu0 0
    %558 = vmatpush1.bf16.msra.mxu0 0
    %559 = vmatprep.subr.bf16.mxu0 0
    %560 = vmatpush1.bf16.msra.mxu0 0
    %561 = vmatprep.subr.bf16.mxu0 0
    %562 = vmatpush1.bf16.msra.mxu0 0
    %563 = vmatprep.subr.bf16.mxu0 0
    %564 = vmatpush1.bf16.msra.mxu0 0
    %565 = vmatprep.subr.bf16.mxu0 0
    %566 = vmatpush1.bf16.msra.mxu0 0
    %567 = vmatprep.mubr.bf16.mxu0 0
    %568 = vmatmul.mubr.bf16.gmra.mrb[0].mxu0 %v533
    %v569 = vpop.f32.mrb[0].mxu0
    %v570 = vadd.f32 0.0, %v569
    %v571 = vpop.f32.mrb[0].mxu0
    %v572 = vpop.f32.mrb[0].mxu0
    %v573 = vpop.f32.mrb[0].mxu0
    %574 = vdwg.mxu0
    %v575 = vadd.f32 %v527, %v570
    %v576 = vxor.u32 %v575, 2147483648
    %v577 = vmul.f32 %v576, 1.442695
    %v578 = vpow.pop %v577
    %v579 = vadd.f32 %v578, 1.0
    %v580 = vrcp.pop %v579
    %v581 = vmul.f32 1.0, %v580
    %v582 = vtanh.pop %v575
    %v583 = vmul.f32 %v581, %v515
    %585 = vrot.lane.b32.xlu0 %v582, 64
    %v586 = vpop.permute.xlu0 %585
    %v588 = vmul.f32 %v581, %v586
    %590 = vrot.lane.b32.xlu0 %v588, 32
    %v591 = vpop.permute.xlu0 %590
    %v593 = vadd.f32 %v583, %v591
    %v594 = vtanh.pop %v593
    %596 = vrot.lane.b32.xlu0 %v594, 64
    %v597 = vpop.permute.xlu0 %596
    %v599 = vmul.f32 %v581, %v597
    %601 = vrot.lane.b32.xlu0 %v599, 32
    %v602 = vpop.permute.xlu0 %601
    %604 = vst.msk [vmem:[#allocation4 + $0x4] sm:$0x1] %vm92, %v602
    %v605 = vld [vmem:[#allocation3 + $0x5] sm:$0x1]
    %v606 = vpack.c.bf16 %v599, %v599
    %608 = vrot.lane.b32.xlu0 %v606, 32
    %v609 = vpop.permute.xlu0 %608
    %v611 = vsel %vm147, %v609, 0
    %613 = vmatprep.subr.bf16.mxu0 0
    %614 = vmatpush1.bf16.msra.mxu0 %v208
    %615 = vmatprep.subr.bf16.mxu0 0
    %616 = vmatpush1.bf16.msra.mxu0 %v209
    %617 = vmatprep.subr.bf16.mxu0 0
    %618 = vmatpush1.bf16.msra.mxu0 0
    %619 = vmatprep.subr.bf16.mxu0 0
    %620 = vmatpush1.bf16.msra.mxu0 0
    %621 = vmatprep.subr.bf16.mxu0 0
    %622 = vmatpush1.bf16.msra.mxu0 0
    %623 = vmatprep.subr.bf16.mxu0 0
    %624 = vmatpush1.bf16.msra.mxu0 0
    %625 = vmatprep.subr.bf16.mxu0 0
    %626 = vmatpush1.bf16.msra.mxu0 0
    %627 = vmatprep.subr.bf16.mxu0 0
    %628 = vmatpush1.bf16.msra.mxu0 0
    %629 = vmatprep.subr.bf16.mxu0 0
    %630 = vmatpush1.bf16.msra.mxu0 0
    %631 = vmatprep.subr.bf16.mxu0 0
    %632 = vmatpush1.bf16.msra.mxu0 0
    %633 = vmatprep.subr.bf16.mxu0 0
    %634 = vmatpush1.bf16.msra.mxu0 0
    %635 = vmatprep.subr.bf16.mxu0 0
    %636 = vmatpush1.bf16.msra.mxu0 0
    %637 = vmatprep.subr.bf16.mxu0 0
    %638 = vmatpush1.bf16.msra.mxu0 0
    %639 = vmatprep.subr.bf16.mxu0 0
    %640 = vmatpush1.bf16.msra.mxu0 0
    %641 = vmatprep.subr.bf16.mxu0 0
    %642 = vmatpush1.bf16.msra.mxu0 0
    %643 = vmatprep.subr.bf16.mxu0 0
    %644 = vmatpush1.bf16.msra.mxu0 0
    %645 = vmatprep.mubr.bf16.mxu0 0
    %646 = vmatmul.mubr.bf16.gmra.mrb[0].mxu0 %v611
    %v647 = vpop.f32.mrb[0].mxu0
    %v648 = vadd.f32 0.0, %v647
    %v649 = vpop.f32.mrb[0].mxu0
    %v650 = vpop.f32.mrb[0].mxu0
    %v651 = vpop.f32.mrb[0].mxu0
    %652 = vdwg.mxu0
    %v653 = vadd.f32 %v605, %v648
    %v654 = vxor.u32 %v653, 2147483648
    %v655 = vmul.f32 %v654, 1.442695
    %v656 = vpow.pop %v655
    %v657 = vadd.f32 %v656, 1.0
    %v658 = vrcp.pop %v657
    %v659 = vmul.f32 1.0, %v658
    %v660 = vtanh.pop %v653
    %v661 = vmul.f32 %v659, %v593
    %663 = vrot.lane.b32.xlu0 %v660, 64
    %v664 = vpop.permute.xlu0 %663
    %v666 = vmul.f32 %v659, %v664
    %668 = vrot.lane.b32.xlu0 %v666, 32
    %v669 = vpop.permute.xlu0 %668
    %v671 = vadd.f32 %v661, %v669
    %v672 = vtanh.pop %v671
    %674 = vrot.lane.b32.xlu0 %v672, 64
    %v675 = vpop.permute.xlu0 %674
    %v677 = vmul.f32 %v659, %v675
    %679 = vrot.lane.b32.xlu0 %v677, 32
    %v680 = vpop.permute.xlu0 %679
    %682 = vst.msk [vmem:[#allocation4 + $0x5] sm:$0x1] %vm92, %v680
    %v683 = vld [vmem:[#allocation3 + $0x6] sm:$0x1]
    %v684 = vpack.c.bf16 %v677, %v677
    %686 = vrot.lane.b32.xlu0 %v684, 32
    %v687 = vpop.permute.xlu0 %686
    %v689 = vsel %vm147, %v687, 0
    %691 = vmatprep.subr.bf16.mxu0 0
    %692 = vmatpush1.bf16.msra.mxu0 %v208
    %693 = vmatprep.subr.bf16.mxu0 0
    %694 = vmatpush1.bf16.msra.mxu0 %v209
    %695 = vmatprep.subr.bf16.mxu0 0
    %696 = vmatpush1.bf16.msra.mxu0 0
    %697 = vmatprep.subr.bf16.mxu0 0
    %698 = vmatpush1.bf16.msra.mxu0 0
    %699 = vmatprep.subr.bf16.mxu0 0
    %700 = vmatpush1.bf16.msra.mxu0 0
    %701 = vmatprep.subr.bf16.mxu0 0
    %702 = vmatpush1.bf16.msra.mxu0 0
    %703 = vmatprep.subr.bf16.mxu0 0
    %704 = vmatpush1.bf16.msra.mxu0 0
    %705 = vmatprep.subr.bf16.mxu0 0
    %706 = vmatpush1.bf16.msra.mxu0 0
    %707 = vmatprep.subr.bf16.mxu0 0
    %708 = vmatpush1.bf16.msra.mxu0 0
    %709 = vmatprep.subr.bf16.mxu0 0
    %710 = vmatpush1.bf16.msra.mxu0 0
    %711 = vmatprep.subr.bf16.mxu0 0
    %712 = vmatpush1.bf16.msra.mxu0 0
    %713 = vmatprep.subr.bf16.mxu0 0
    %714 = vmatpush1.bf16.msra.mxu0 0
    %715 = vmatprep.subr.bf16.mxu0 0
    %716 = vmatpush1.bf16.msra.mxu0 0
    %717 = vmatprep.subr.bf16.mxu0 0
    %718 = vmatpush1.bf16.msra.mxu0 0
    %719 = vmatprep.subr.bf16.mxu0 0
    %720 = vmatpush1.bf16.msra.mxu0 0
    %721 = vmatprep.subr.bf16.mxu0 0
    %722 = vmatpush1.bf16.msra.mxu0 0
    %723 = vmatprep.mubr.bf16.mxu0 0
    %724 = vmatmul.mubr.bf16.gmra.mrb[0].mxu0 %v689
    %v725 = vpop.f32.mrb[0].mxu0
    %v726 = vadd.f32 0.0, %v725
    %v727 = vpop.f32.mrb[0].mxu0
    %v728 = vpop.f32.mrb[0].mxu0
    %v729 = vpop.f32.mrb[0].mxu0
    %730 = vdwg.mxu0
    %v731 = vadd.f32 %v683, %v726
    %v732 = vxor.u32 %v731, 2147483648
    %v733 = vmul.f32 %v732, 1.442695
    %v734 = vpow.pop %v733
    %v735 = vadd.f32 %v734, 1.0
    %v736 = vrcp.pop %v735
    %v737 = vmul.f32 1.0, %v736
    %v738 = vtanh.pop %v731
    %v739 = vmul.f32 %v737, %v671
    %741 = vrot.lane.b32.xlu0 %v738, 64
    %v742 = vpop.permute.xlu0 %741
    %v744 = vmul.f32 %v737, %v742
    %746 = vrot.lane.b32.xlu0 %v744, 32
    %v747 = vpop.permute.xlu0 %746
    %v749 = vadd.f32 %v739, %v747
    %v750 = vtanh.pop %v749
    %752 = vrot.lane.b32.xlu0 %v750, 64
    %v753 = vpop.permute.xlu0 %752
    %v755 = vmul.f32 %v737, %v753
    %757 = vrot.lane.b32.xlu0 %v755, 32
    %v758 = vpop.permute.xlu0 %757
    %760 = vst.msk [vmem:[#allocation4 + $0x6] sm:$0x1] %vm92, %v758
    %v761 = vld [vmem:[#allocation3 + $0x7] sm:$0x1]
    %v762 = vpack.c.bf16 %v755, %v755
    %764 = vrot.lane.b32.xlu0 %v762, 32
    %v765 = vpop.permute.xlu0 %764
    %v767 = vsel %vm147, %v765, 0
    %769 = vmatprep.subr.bf16.mxu0 0
    %770 = vmatpush1.bf16.msra.mxu0 %v208
    %771 = vmatprep.subr.bf16.mxu0 0
    %772 = vmatpush1.bf16.msra.mxu0 %v209
    %773 = vmatprep.subr.bf16.mxu0 0
    %774 = vmatpush1.bf16.msra.mxu0 0
    %775 = vmatprep.subr.bf16.mxu0 0
    %776 = vmatpush1.bf16.msra.mxu0 0
    %777 = vmatprep.subr.bf16.mxu0 0
    %778 = vmatpush1.bf16.msra.mxu0 0
    %779 = vmatprep.subr.bf16.mxu0 0
    %780 = vmatpush1.bf16.msra.mxu0 0
    %781 = vmatprep.subr.bf16.mxu0 0
    %782 = vmatpush1.bf16.msra.mxu0 0
    %783 = vmatprep.subr.bf16.mxu0 0
    %784 = vmatpush1.bf16.msra.mxu0 0
    %785 = vmatprep.subr.bf16.mxu0 0
    %786 = vmatpush1.bf16.msra.mxu0 0
    %787 = vmatprep.subr.bf16.mxu0 0
    %788 = vmatpush1.bf16.msra.mxu0 0
    %789 = vmatprep.subr.bf16.mxu0 0
    %790 = vmatpush1.bf16.msra.mxu0 0
    %791 = vmatprep.subr.bf16.mxu0 0
    %792 = vmatpush1.bf16.msra.mxu0 0
    %793 = vmatprep.subr.bf16.mxu0 0
    %794 = vmatpush1.bf16.msra.mxu0 0
    %795 = vmatprep.subr.bf16.mxu0 0
    %796 = vmatpush1.bf16.msra.mxu0 0
    %797 = vmatprep.subr.bf16.mxu0 0
    %798 = vmatpush1.bf16.msra.mxu0 0
    %799 = vmatprep.subr.bf16.mxu0 0
    %800 = vmatpush1.bf16.msra.mxu0 0
    %801 = vmatprep.mubr.bf16.mxu0 0
    %802 = vmatmul.mubr.bf16.gmra.mrb[0].mxu0 %v767
    %v803 = vpop.f32.mrb[0].mxu0
    %v804 = vadd.f32 0.0, %v803
    %v805 = vpop.f32.mrb[0].mxu0
    %v806 = vpop.f32.mrb[0].mxu0
    %v807 = vpop.f32.mrb[0].mxu0
    %808 = vdwg.mxu0
    %v809 = vadd.f32 %v761, %v804
    %v810 = vxor.u32 %v809, 2147483648
    %v811 = vmul.f32 %v810, 1.442695
    %v812 = vpow.pop %v811
    %v813 = vadd.f32 %v812, 1.0
    %v814 = vrcp.pop %v813
    %v815 = vmul.f32 1.0, %v814
    %v816 = vtanh.pop %v809
    %v817 = vmul.f32 %v815, %v749
    %819 = vrot.lane.b32.xlu0 %v816, 64
    %v820 = vpop.permute.xlu0 %819
    %v822 = vmul.f32 %v815, %v820
    %824 = vrot.lane.b32.xlu0 %v822, 32
    %v825 = vpop.permute.xlu0 %824
    %v827 = vadd.f32 %v817, %v825
    %v828 = vtanh.pop %v827
    %830 = vrot.lane.b32.xlu0 %v828, 64
    %v831 = vpop.permute.xlu0 %830
    %v833 = vmul.f32 %v815, %v831
    %835 = vrot.lane.b32.xlu0 %v833, 32
    %v836 = vpop.permute.xlu0 %835
    %838 = vst.msk [vmem:[#allocation4 + $0x7] sm:$0x1] %vm92, %v836
    %839 = vst.msk [vmem:[%s10] sm:$0x1] %vm92, %v836
    %841 = vrot.lane.b32.xlu0 %v827, 96
    %v842 = vpop.permute.xlu0 %841
    %844 = vst.msk [vmem:[%s11] sm:$0x1] %vm92, %v842
    %v845 = vld [vmem:[#allocation4] sm:$0xff]
    %v846 = vpack.c.bf16 %v845, %v845
    %v847 = vld [vmem:[#allocation12] sm:$0xf]
    %v848 = vld [vmem:[#allocation12 + $0x4] sm:$0xf]
    %v849 = vld [vmem:[#allocation12 + $0x8] sm:$0xf]
    %v850 = vld [vmem:[#allocation12 + $0xc] sm:$0xf]
    %v851 = vld [vmem:[%s6] sm:$0x1]
    %v853 = vlaneseq
    %v854 = vshrl.u32 %v853, 7
    %v855 = vsub.s32 0, %v854
    %v856 = vrot.slane %v851, %v855
    %v862 = vunpack.c.l.b16 %v847
    %v863 = vunpack.c.l.b16 %v848
    %v864 = vunpack.c.l.b16 %v849
    %v865 = vunpack.c.l.b16 %v850
    %v866 = vpack.c.b16 %v863, %v862
    %v867 = vpack.c.b16 %v865, %v864
    %v871 = vsel %vm147, %v846, 0
    %873 = vmatprep.subr.bf16.mxu0 0
    %874 = vmatpush1.bf16.msra.mxu0 %v866
    %875 = vmatprep.subr.bf16.mxu0 0
    %876 = vmatpush1.bf16.msra.mxu0 %v867
    %877 = vmatprep.subr.bf16.mxu0 0
    %878 = vmatpush1.bf16.msra.mxu0 0
    %879 = vmatprep.subr.bf16.mxu0 0
    %880 = vmatpush1.bf16.msra.mxu0 0
    %881 = vmatprep.subr.bf16.mxu0 0
    %882 = vmatpush1.bf16.msra.mxu0 0
    %883 = vmatprep.subr.bf16.mxu0 0
    %884 = vmatpush1.bf16.msra.mxu0 0
    %885 = vmatprep.subr.bf16.mxu0 0
    %886 = vmatpush1.bf16.msra.mxu0 0
    %887 = vmatprep.subr.bf16.mxu0 0
    %888 = vmatpush1.bf16.msra.mxu0 0
    %889 = vmatprep.subr.bf16.mxu0 0
    %890 = vmatpush1.bf16.msra.mxu0 0
    %891 = vmatprep.subr.bf16.mxu0 0
    %892 = vmatpush1.bf16.msra.mxu0 0
    %893 = vmatprep.subr.bf16.mxu0 0
    %894 = vmatpush1.bf16.msra.mxu0 0
    %895 = vmatprep.subr.bf16.mxu0 0
    %896 = vmatpush1.bf16.msra.mxu0 0
    %897 = vmatprep.subr.bf16.mxu0 0
    %898 = vmatpush1.bf16.msra.mxu0 0
    %899 = vmatprep.subr.bf16.mxu0 0
    %900 = vmatpush1.bf16.msra.mxu0 0
    %901 = vmatprep.subr.bf16.mxu0 0
    %902 = vmatpush1.bf16.msra.mxu0 0
    %903 = vmatprep.subr.bf16.mxu0 0
    %904 = vmatpush1.bf16.msra.mxu0 0
    %905 = vmatprep.mubr.bf16.mxu0 0
    %906 = vmatmul.mubr.bf16.gmra.mrb[0].mxu0 %v871
    %v907 = vpop.f32.mrb[0].mxu0
    %v908 = vadd.f32 %v856, %v907
    %v909 = vpop.f32.mrb[0].mxu0
    %v910 = vpop.f32.mrb[0].mxu0
    %v911 = vpop.f32.mrb[0].mxu0
    %912 = vdwg.mxu0
    %913 = vmax.xlane.f32.xlu0 %v908
    %v914 = vpop.xlane.xlu0 %913
    %v915 = vsub.f32 %v908, %v914
    %v916 = vmul.f32 %v915, 1.442695
    %v917 = vpow.pop %v916
    %918 = vadd.xlane.f32.xlu0 %v917
    %v919 = vpop.xlane.xlu0 %918
    %v920 = vlog2.pop %v919
    %v921 = vmul.f32 %v920, 0.6931472
    %v922 = vadd.f32 %v921, %v914
    %v923 = vsub.f32 %v908, %v922
    %924 = vst [vmem:[#allocation13] sm:$0xff] %v923
    // Predicated region
    $region54: #{lstmnet_forward.1} parent=1 // pred_check
      _
    $region55: #{lstmnet_forward.1} parent=1 // pred_check_branch
      %926 = sbr.rel (0) target = $region57
    $region56: #{lstmnet_forward.1} parent=1 // pred_region
      %s928 = ssub.s32 128, 128
      %929 = vsyncadd [#allocation7], %s928
      %s931 = sshll.u32 [#allocation13], 4
      %s932 = int_to_ptr.vmem [resolvable:$true] %s931
      %934 = dma.vmem_to_hbm [thread:$0]  %s932, 128, %s9, [#allocation7]
    $region57: #{lstmnet_forward.1} parent=1 // pred_fallthru
      _
    // Predicated region
    $region58: #{lstmnet_forward.1} parent=1 // pred_check
      _
    $region59: #{lstmnet_forward.1} parent=1 // pred_check_branch
      %936 = sbr.rel (0) target = $region61
    $region60: #{lstmnet_forward.1} parent=1 // pred_region
      _
    $region61: #{lstmnet_forward.1} parent=1 // pred_fallthru
      _
    // Predicated region
    $region62: #{lstmnet_forward.1} parent=1 // pred_check
      _
    $region63: #{lstmnet_forward.1} parent=1 // pred_check_branch
      %938 = sbr.rel (0) target = $region65
    $region64: #{lstmnet_forward.1} parent=1 // pred_region
      _
    $region65: #{lstmnet_forward.1} parent=1 // pred_fallthru
      _
    // Predicated region
    $region66: #{lstmnet_forward.1} parent=1 // pred_check
      _
    $region67: #{lstmnet_forward.1} parent=1 // pred_check_branch
      %940 = sbr.rel (0) target = $region69
    $region68: #{lstmnet_forward.1} parent=1 // pred_region
      %941 = dma.done [#allocation7], 128
    $region69: #{lstmnet_forward.1} parent=1 // pred_fallthru
      _
    // Predicated region
    $region70: #{lstmnet_forward.1} parent=1 // pred_check
      _
    $region71: #{lstmnet_forward.1} parent=1 // pred_check_branch
      %943 = sbr.rel (0) target = $region73
    $region72: #{lstmnet_forward.1} parent=1 // pred_region
      _
    $region73: #{lstmnet_forward.1} parent=1 // pred_fallthru
      _
    // Predicated region
    $region74: #{lstmnet_forward.1} parent=1 // pred_check
      _
    $region75: #{lstmnet_forward.1} parent=1 // pred_check_branch
      %945 = sbr.rel (0) target = $region77
    $region76: #{lstmnet_forward.1} parent=1 // pred_region
      _
    $region77: #{lstmnet_forward.1} parent=1 // pred_fallthru
      _
    %946 = vsyncpa [#allocation6], 1
    %947 = vsyncpa [#allocation11], 1
    %948 = vsyncpa [#allocation7], 1
    %949 = vsyncpa [#allocation8], 1

</llo_original>
